<compile_context>
chip_gen: v7x
topology: tpu7x:2x2x1
jax: 0.10.0
libtpu: 0.0.40
codegen_flags: <defaults>
</compile_context>

<pallas_src>
import functools

import jax
import jax.numpy as jnp
from jax.experimental import pallas as pl
from jax.experimental.pallas import tpu as pltpu

CIN = 64
COUT = 64
KH = KW = 3


def _round_up(x, m):
    return ((x + m - 1) // m) * m


def _conv3x3_relu_kernel(x_ref, halo_ref, w_ref, o_ref, *, th, w, wp):
    # x_ref:    (th, W, CIN)       non-overlapping row tile of the activation
    # halo_ref: (2, W, CIN)        [row above tile, row below tile] (zero at edges)
    # w_ref:    (KH*CIN, KW*COUT)  Wb[kh*CIN+ci, kw*COUT+co] = weight[co,ci,kh,kw]
    # o_ref:    (th, W, COUT)
    cdt = x_ref.dtype

    # Assemble the zero-padded (th+2, wp, CIN) tile in VMEM.  wp is W+2 rounded
    # up to the sublane tiling so the reshapes below are layout-free; the extra
    # zero columns only add ~2/W wasted MACs.
    rows = jnp.concatenate([halo_ref[0:1], x_ref[...], halo_ref[1:2]], axis=0)
    zl = jnp.zeros((th + 2, 1, CIN), cdt)
    zr = jnp.zeros((th + 2, wp - w - 1, CIN), cdt)
    xt = jnp.concatenate([zl, rows, zr], axis=1)                # (th+2, wp, CIN)

    # kh taps folded onto the lane axis -> im2col slab, built exactly once.
    slab = jnp.concatenate([xt[kh:kh + th] for kh in range(KH)],
                           axis=-1)                             # (th, wp, KH*CIN)

    # Single MXU contraction; kw lives on the output (N) dimension.
    y = jnp.dot(slab.reshape(th * wp, KH * CIN), w_ref[...],
                preferred_element_type=jnp.float32)             # (th*wp, KW*COUT)
    y = y.reshape(th, wp, KW * COUT)

    # Combine the kw taps with two W-shifted VPU adds, ReLU, single store.
    # TODO(synk): lane-dense (th, W*COUT) output packing if the vst path shows
    # up in xprof now that MXU time is ~3x lower.
    out = (y[:, 0:w, 0:COUT]
           + y[:, 1:w + 1, COUT:2 * COUT]
           + y[:, 2:w + 2, 2 * COUT:3 * COUT])
    o_ref[...] = jnp.maximum(out, 0.0).astype(o_ref.dtype)


def _pick_tiling(H, W, N, itm, ito, tile_h, vmem_cap):
    """Choose the row-tile size from a per-step VMEM footprint budget."""
    sub = 16 if itm <= 2 else 8              # sublane tiling of the compute dtype
    wp = _round_up(W + 2, sub)

    def step_bytes(th):
        in_blk = th * W * CIN * itm
        halo_blk = 2 * W * CIN * itm
        w_blk = (KH * CIN) * (KW * COUT) * itm
        out_blk = th * W * COUT * ito
        xt = (th + 2) * wp * CIN * itm       # padded tile
        slab = th * wp * KH * CIN * itm      # im2col slab
        y = th * wp * KW * COUT * 4          # f32 matmul result
        acc = th * W * COUT * 4              # combined taps before cast
        return 2 * (in_blk + halo_blk + w_blk + out_blk) + xt + slab + y + acc

    budget = int(0.35 * vmem_cap)
    th = max(1, min(tile_h, H))
    while th > 1 and step_bytes(th) > budget:
        th = max(1, th // 2)
    # v7x megacore: make sure there are >= 2 parallel grid steps.
    if N * pl.cdiv(H, th) < 2 and H >= 2:
        th = pl.cdiv(H, 2)
    # Prefer a divisor of H close to the budgeted size (avoids a bottom-pad
    # copy of the activation).
    for cand in range(th, max(1, (3 * th) // 4) - 1, -1):
        if H % cand == 0:
            th = cand
            break
    return th, wp, step_bytes(th)


def conv_relu_block_nhwc(x_nhwc, weight_oihw, *, tile_h=64,
                         compute_dtype=jnp.bfloat16, out_dtype=None):
    """Conv2d(64->64, 3x3, pad=1, no bias) + ReLU on an NHWC activation."""
    N, H, W, C = x_nhwc.shape
    assert C == CIN and weight_oihw.shape == (COUT, CIN, KH, KW)
    out_dtype = x_nhwc.dtype if out_dtype is None else out_dtype
    # TODO(synk): add W tiling (2-column halo) for very large W; today only
    # tile_h shrinks to keep the per-step footprint inside VMEM.

    try:
        info = pltpu.get_tpu_info()
        vmem_cap = int(getattr(info, "vmem_capacity_bytes", 64 * 1024 * 1024))
    except Exception:  # CPU interpret mode / older runtimes
        vmem_cap = 64 * 1024 * 1024

    itm = jnp.dtype(compute_dtype).itemsize
    ito = jnp.dtype(out_dtype).itemsize
    th, wp, step_bytes = _pick_tiling(H, W, N, itm, ito, tile_h, vmem_cap)
    n_h = pl.cdiv(H, th)
    h_total = n_h * th

    # RHS with kw on the output dimension:
    # Wb[kh*CIN + ci, kw*COUT + co] = weight[co, ci, kh, kw].
    w_flat = jnp.transpose(weight_oihw, (2, 1, 3, 0)).reshape(
        KH * CIN, KW * COUT).astype(compute_dtype)

    xm = x_nhwc.astype(compute_dtype)
    if h_total > H:
        xm = jnp.pad(xm, ((0, 0), (0, h_total - H), (0, 0), (0, 0)))

    # Tiny halo-row side array: halo[n, t, 0] = row above tile t,
    # halo[n, t, 1] = row below tile t (zeros at the image borders).
    zrow = jnp.zeros((N, 1, W, CIN), compute_dtype)
    if n_h > 1:
        tops = jnp.concatenate([zrow, xm[:, th - 1:h_total - 1:th]], axis=1)
        bots = jnp.concatenate([xm[:, th:h_total:th], zrow], axis=1)
    else:
        tops, bots = zrow, zrow
    halo = jnp.stack([tops, bots], axis=2)        # (N, n_h, 2, W, CIN)

    vmem_limit = int(min(int(0.75 * vmem_cap),
                         max(32 * 1024 * 1024, 2 * step_bytes)))

    kernel = functools.partial(_conv3x3_relu_kernel, th=th, w=W, wp=wp)

    out = pl.pallas_call(
        kernel,
        out_shape=jax.ShapeDtypeStruct((N, h_total, W, COUT), out_dtype),
        grid_spec=pltpu.PrefetchScalarGridSpec(
            num_scalar_prefetch=0,
            grid=(N, n_h),
            in_specs=[
                pl.BlockSpec((None, th, W, CIN), lambda n, t: (n, t, 0, 0)),
                pl.BlockSpec((None, None, 2, W, CIN),
                             lambda n, t: (n, t, 0, 0, 0)),
                pl.BlockSpec((KH * CIN, KW * COUT), lambda n, t: (0, 0)),
            ],
            out_specs=pl.BlockSpec((None, th, W, COUT),
                                   lambda n, t: (n, t, 0, 0)),
        ),
        compiler_params=pltpu.CompilerParams(
            dimension_semantics=("parallel", "parallel"),
            vmem_limit_bytes=vmem_limit),
    )(xm, halo, w_flat)

    return out[:, :H] if h_total > H else out


def conv_relu_block(x_nchw, weight_oihw, *, tile_h=64,
                    compute_dtype=jnp.bfloat16, out_dtype=None):
    """PyTorch-facing NCHW wrapper.  When stacking many blocks (VDSR uses ~18),
    call conv_relu_block_nhwc directly (bf16 in / bf16 out) and transpose once
    at the model boundary instead of per block."""
    x_nhwc = jnp.transpose(x_nchw, (0, 2, 3, 1))
    y = conv_relu_block_nhwc(x_nhwc, weight_oihw, tile_h=tile_h,
                             compute_dtype=compute_dtype, out_dtype=out_dtype)
    return jnp.transpose(y, (0, 3, 1, 2))


if __name__ == "__main__":
    key = jax.random.PRNGKey(0)
    key_x, key_w = jax.random.split(key)

    N, H, W = 2, 16, 16
    x = jax.random.normal(key_x, (N, CIN, H, W), dtype=jnp.float32)

    fan_in = CIN * KH * KW
    bound = 1.0 / jnp.sqrt(fan_in)
    weight = jax.random.uniform(key_w, (COUT, CIN, KH, KW),
                                minval=-bound, maxval=bound, dtype=jnp.float32)

    def ref_conv_relu(xi, wi):
        y = jax.lax.conv_general_dilated(
            xi, wi, window_strides=(1, 1), padding=((1, 1), (1, 1)),
            dimension_numbers=("NCHW", "OIHW", "NCHW"))
        return jnp.maximum(y, 0.0)

    # Exact-precision path (f32 inputs, f32 accumulation).
    y_f32 = jax.block_until_ready(
        conv_relu_block(x, weight, compute_dtype=jnp.float32))
    assert y_f32.shape == (N, COUT, H, W)
    assert jnp.allclose(y_f32, ref_conv_relu(x, weight), rtol=1e-4, atol=1e-4)

    # Fast path (bf16 inputs/weights, f32 accumulation); compare against a
    # bf16-cast reference so the tolerance is not seed-sensitive.
    y_bf16 = jax.block_until_ready(conv_relu_block(x, weight))
    x_b = x.astype(jnp.bfloat16).astype(jnp.float32)
    w_b = weight.astype(jnp.bfloat16).astype(jnp.float32)
    assert y_bf16.shape == (N, COUT, H, W)
    assert jnp.allclose(y_bf16.astype(jnp.float32), ref_conv_relu(x_b, w_b),
                        rtol=2e-2, atol=2e-2)

    print("KERNEL_OK")
</pallas_src>

<mosaic_0001>
module attributes {stable_mosaic.version = 11 : i64} {
  func.func @_conv3x3_relu_kernel(%arg0: i32, %arg1: i32, %arg2: memref<1x16x16x64xf32, #tpu.memory_space<vmem>>, %arg3: memref<1x1x2x16x64xf32, #tpu.memory_space<vmem>>, %arg4: memref<192x192xf32, #tpu.memory_space<vmem>>, %arg5: memref<1x16x16x64xf32, #tpu.memory_space<vmem>>) attributes {dimension_semantics = [#tpu.dimension_semantics<parallel>, #tpu.dimension_semantics<parallel>], iteration_bounds = array<i64: 2, 1>, scalar_prefetch = 0 : i64, scratch_operands = 0 : i64, tpu.core_type = #tpu.core_type<tc>, window_params = [{transform_indices = @transform_0, window_bounds = array<i64: 1, 16, 16, 64>}, {transform_indices = @transform_1, window_bounds = array<i64: 1, 1, 2, 16, 64>}, {pipeline_mode = #tpu.pipeline_mode<synchronous>, transform_indices = @transform_2, window_bounds = array<i64: 192, 192>}, {transform_indices = @transform_3, window_bounds = array<i64: 1, 16, 16, 64>}]} {
    %c0 = arith.constant 0 : index
    %c0_0 = arith.constant 0 : index
    %c0_1 = arith.constant 0 : index
    %c0_2 = arith.constant 0 : index
    %c0_3 = arith.constant 0 : index
    %0 = vector.load %arg3[%c0, %c0_0, %c0_1, %c0_2, %c0_3] : memref<1x1x2x16x64xf32, #tpu.memory_space<vmem>>, vector<1x1x1x16x64xf32>
    %1 = vector.shape_cast %0 : vector<1x1x1x16x64xf32> to vector<1x16x64xf32>
    %c0_4 = arith.constant 0 : index
    %c0_5 = arith.constant 0 : index
    %c0_6 = arith.constant 0 : index
    %c0_7 = arith.constant 0 : index
    %2 = vector.load %arg2[%c0_4, %c0_5, %c0_6, %c0_7] : memref<1x16x16x64xf32, #tpu.memory_space<vmem>>, vector<1x16x16x64xf32>
    %3 = vector.shape_cast %2 : vector<1x16x16x64xf32> to vector<16x16x64xf32>
    %c0_8 = arith.constant 0 : index
    %c0_9 = arith.constant 0 : index
    %c1 = arith.constant 1 : index
    %c0_10 = arith.constant 0 : index
    %c0_11 = arith.constant 0 : index
    %4 = vector.load %arg3[%c0_8, %c0_9, %c1, %c0_10, %c0_11] : memref<1x1x2x16x64xf32, #tpu.memory_space<vmem>>, vector<1x1x1x16x64xf32>
    %5 = vector.shape_cast %4 : vector<1x1x1x16x64xf32> to vector<1x16x64xf32>
    %6 = tpu.concatenate %1, %3, %5 in 0 : vector<1x16x64xf32>, vector<16x16x64xf32>, vector<1x16x64xf32> -> vector<18x16x64xf32>
    %cst = arith.constant 0.000000e+00 : f32
    %7 = vector.broadcast %cst : f32 to vector<18x1x64xf32>
    %cst_12 = arith.constant 0.000000e+00 : f32
    %8 = vector.broadcast %cst_12 : f32 to vector<18x7x64xf32>
    %9 = tpu.concatenate %7, %6, %8 in 1 : vector<18x1x64xf32>, vector<18x16x64xf32>, vector<18x7x64xf32> -> vector<18x24x64xf32>
    %10 = vector.extract_strided_slice %9 {offsets = [0, 0, 0], sizes = [16, 24, 64], strides = [1, 1, 1]} : vector<18x24x64xf32> to vector<16x24x64xf32>
    %11 = vector.extract_strided_slice %9 {offsets = [1, 0, 0], sizes = [16, 24, 64], strides = [1, 1, 1]} : vector<18x24x64xf32> to vector<16x24x64xf32>
    %12 = vector.extract_strided_slice %9 {offsets = [2, 0, 0], sizes = [16, 24, 64], strides = [1, 1, 1]} : vector<18x24x64xf32> to vector<16x24x64xf32>
    %13 = tpu.concatenate %10, %11, %12 in 2 : vector<16x24x64xf32>, vector<16x24x64xf32>, vector<16x24x64xf32> -> vector<16x24x192xf32>
    %14 = vector.shape_cast %13 : vector<16x24x192xf32> to vector<384x192xf32>
    %c0_13 = arith.constant 0 : index
    %c0_14 = arith.constant 0 : index
    %15 = vector.load %arg4[%c0_13, %c0_14] : memref<192x192xf32, #tpu.memory_space<vmem>>, vector<192x192xf32>
    %cst_15 = arith.constant dense<0.000000e+00> : vector<384x192xf32>
    %16 = tpu.matmul %14, %15, %cst_15 {dimension_numbers = #tpu.dot_dimension_numbers<[1], [0], [0], [1], [0, 0, 1, 1], [], []>} : vector<384x192xf32>, vector<192x192xf32>, vector<384x192xf32> -> vector<384x192xf32>
    %17 = vector.shape_cast %16 : vector<384x192xf32> to vector<16x24x192xf32>
    %18 = vector.extract_strided_slice %17 {offsets = [0, 0, 0], sizes = [16, 16, 64], strides = [1, 1, 1]} : vector<16x24x192xf32> to vector<16x16x64xf32>
    %19 = vector.extract_strided_slice %17 {offsets = [0, 1, 64], sizes = [16, 16, 64], strides = [1, 1, 1]} : vector<16x24x192xf32> to vector<16x16x64xf32>
    %20 = arith.addf %18, %19 : vector<16x16x64xf32>
    %21 = vector.extract_strided_slice %17 {offsets = [0, 2, 128], sizes = [16, 16, 64], strides = [1, 1, 1]} : vector<16x24x192xf32> to vector<16x16x64xf32>
    %22 = arith.addf %20, %21 : vector<16x16x64xf32>
    %cst_16 = arith.constant 0.000000e+00 : f32
    %23 = vector.broadcast %cst_16 : f32 to vector<16x16x64xf32>
    %24 = arith.maximumf %22, %23 : vector<16x16x64xf32>
    %c0_17 = arith.constant 0 : index
    %c0_18 = arith.constant 0 : index
    %c0_19 = arith.constant 0 : index
    %c0_20 = arith.constant 0 : index
    %25 = vector.load %arg5[%c0_17, %c0_18, %c0_19, %c0_20] : memref<1x16x16x64xf32, #tpu.memory_space<vmem>>, vector<1x16x16x64xf32>
    %26 = vector.shape_cast %25 : vector<1x16x16x64xf32> to vector<16x16x64xf32>
    %27 = vector.shape_cast %24 : vector<16x16x64xf32> to vector<1x16x16x64xf32>
    tpu.vector_store %arg5[%c0_17, %c0_18, %c0_19, %c0_20], %27 {strides = array<i32>} : memref<1x16x16x64xf32, #tpu.memory_space<vmem>>, vector<1x16x16x64xf32>,
    return
  }
  func.func @transform_0(%arg0: i32, %arg1: i32) -> (i32, i32, i32, i32) {
    %c0_i32 = arith.constant 0 : i32
    %c0_i32_0 = arith.constant 0 : i32
    %c0_i32_1 = arith.constant 0 : i32
    return %arg0, %arg1, %c0_i32, %c0_i32_0 : i32, i32, i32, i32
  }
  func.func @transform_1(%arg0: i32, %arg1: i32) -> (i32, i32, i32, i32, i32) {
    %c0_i32 = arith.constant 0 : i32
    %c0_i32_0 = arith.constant 0 : i32
    %c0_i32_1 = arith.constant 0 : i32
    %c0_i32_2 = arith.constant 0 : i32
    return %arg0, %arg1, %c0_i32, %c0_i32_0, %c0_i32_1 : i32, i32, i32, i32, i32
  }
  func.func @transform_2(%arg0: i32, %arg1: i32) -> (i32, i32) {
    %c0_i32 = arith.constant 0 : i32
    %c0_i32_0 = arith.constant 0 : i32
    %c0_i32_1 = arith.constant 0 : i32
    return %c0_i32, %c0_i32_0 : i32, i32
  }
  func.func @transform_3(%arg0: i32, %arg1: i32) -> (i32, i32, i32, i32) {
    %c0_i32 = arith.constant 0 : i32
    %c0_i32_0 = arith.constant 0 : i32
    %c0_i32_1 = arith.constant 0 : i32
    return %arg0, %arg1, %c0_i32, %c0_i32_0 : i32, i32, i32, i32
  }
}

</mosaic_0001>

<llo_original>
// kernel: tpu_custom_call.1
$region0: #{tpu_custom_call.1}
  #allocation0 [shape = 'u32[]', space=smem, size = 0x4, offset = 0x4, fixed_abs, tag = 'smem constant byte address 0x4 - core index']
  #allocation1 [shape = 'u32[144,128]{1,0:T(1,128)}', space=vmem, size = 0x12000, scoped, tag = 'internal scratch']
  %s0 = inlined_call_operand.hbm [shape: f32[2,16,16,64], index: 0, kind: input, shape index: {}]
  %s1 = inlined_call_operand.hbm [shape: f32[2,1,2,16,64], index: 1, kind: input, shape index: {}]
  %s2 = inlined_call_operand.hbm [shape: f32[192,192], index: 2, kind: input, shape index: {}]
  %s3 = inlined_call_operand.hbm [shape: f32[2,16,16,64], index: 3, kind: output, shape index: {}]
  %s4 = sld [smem:[#allocation0]]
  $region57: #{tpu_custom_call.1} parent=0
    _
  %s6 = ssub.s32 1, %s4
  %s7 = scalar_select 0, %s6, %s4
  $region1: #{tpu_custom_call.1} parent=0
    #allocation2 [shape = 'u8[262144]{0}', space=vmem, size = 0x40000, scoped, tag = 'input window, operand 0']
    #allocation3 [shape = 's32[2]{0}', space=sflag, size = 0x8, scoped, tag = 'scoped memory for tpu_custom_call.1']
    #allocation4 [shape = 's32[2]{0}', space=sflag, size = 0x8, scoped, tag = 'scoped memory for tpu_custom_call.1']
    #allocation5 [shape = 'u8[32768]{0}', space=vmem, size = 0x8000, scoped, tag = 'input window, operand 1']
    #allocation6 [shape = 's32[2]{0}', space=sflag, size = 0x8, scoped, tag = 'scoped memory for tpu_custom_call.1']
    #allocation7 [shape = 'u8[196608]{0}', space=vmem, size = 0x30000, scoped, tag = 'input window, operand 2, single buffered']
    #allocation8 [shape = 'u8[262144]{0}', space=vmem, size = 0x40000, scoped, tag = 'output window, operand 0']
    %8 = vsyncpa [#allocation3], 0
    %s9 = scalar_lea.sflag [#allocation3], 1
    %10 = vsyncpa %s9, 0
    %11 = vsyncpa [#allocation6], 0
    %s12 = scalar_lea.sflag [#allocation6], 1
    %13 = vsyncpa %s12, 0
    %14 = vsyncpa [#allocation4], 0
    %s15 = scalar_lea.sflag [#allocation4], 1
    %16 = vsyncpa %s15, 0
    loop: start=0, step=1, limit=4
    $region2: #{tpu_custom_call.1} parent=1 // loop_pre_header
      _
    $region3: #{tpu_custom_call.1} parent=1 // loop_header
      %s18 = sphi 0, %s22
      %p19 = scmp.ge.s32.totalorder %s18, 4
      %s25 = sphi 0, %s37
      %s26 = sphi 0, %s33
      %s27 = sphi 0, %s25
      %s28 = sphi 0, %s26
      %s29 = sphi 0, %s27
      %s30 = sphi 0, %s28
      %s42 = sphi 0, %s44
      %s45 = sphi 0, %s42
      %s46 = sphi 0, %s45
      %s62 = sphi 0, %s46
      %s70 = sphi 0, %s72
      %s73 = sphi 0, %s70
      %s74 = sphi 0, %s73
      %s90 = sphi 0, %s74
      %s94 = sphi 0, %s94
      %s96 = sphi 0, %s94
      %s97 = sphi 0, %s96
      %s111 = sphi 0, %s97
      %s119 = sphi 0, %s121
      %s122 = sphi 0, %s119
      %s123 = sphi 0, %s122
      %s139 = sphi 0, %s123
    $region4: #{tpu_custom_call.1} parent=1 // loop_header_branch
      %21 = sbr.rel (%p19) target = $region8
    $region5: #{tpu_custom_call.1} parent=1 // loop_body
      %s23 = ssub.s32 %s18, 1
      %s24 = ssub.s32 %s18, 2
      %s31 = sadd.s32 1, %s26
      %p32 = scmp.ge.s32.totalorder %s31, 1
      %s33 = scalar_select %p32, 0, %s31
      %s34 = sadd.s32 1, %s25
      %s35 = scalar_select %p32, %s34, %s25
      %p36 = scmp.ge.s32.totalorder %s35, 2
      %s37 = scalar_select %p36, 0, %s35
      %s38 = ssub.s32 %s25, %s37
      %s39 = ssub.s32 %s26, %s33
      %s40 = sor.u32 %s38, %s39
      %p41 = scmp.eq.s32.totalorder %s40, 0
      %s43 = sadd.s32 %s42, 1
      %s44 = scalar_select %p41, %s42, %s43
      %p47 = pneg %p41
      %p48 = scmp.eq.s32.totalorder %s18, 1
      %p49 = por %p47, %p48
      %p50 = scmp.ne.s32.totalorder %s42, %s45
      %p51 = scmp.eq.s32.totalorder %s18, 0
      %p52 = por %p50, %p51
      %p53 = scmp.ne.s32.totalorder %s42, %s45
      %p54 = scmp.eq.s32.totalorder %s23, 1
      %p55 = por %p53, %p54
      %p56 = scmp.ne.s32.totalorder %s45, %s46
      %p57 = scmp.eq.s32.totalorder %s23, 0
      %p58 = por %p56, %p57
      %p59 = scmp.ne.s32.totalorder %s45, %s46
      %p60 = scmp.eq.s32.totalorder %s24, 1
      %p61 = por %p59, %p60
      %p63 = scmp.ne.s32.totalorder %s46, %s62
      %p64 = scmp.eq.s32.totalorder %s24, 0
      %p65 = por %p63, %p64
      %s66 = ssub.s32 %s25, %s37
      %s67 = ssub.s32 %s26, %s33
      %s68 = sor.u32 %s66, %s67
      %p69 = scmp.eq.s32.totalorder %s68, 0
      %s71 = sadd.s32 %s70, 1
      %s72 = scalar_select %p69, %s70, %s71
      %p75 = pneg %p69
      %p76 = scmp.eq.s32.totalorder %s18, 1
      %p77 = por %p75, %p76
      %p78 = scmp.ne.s32.totalorder %s70, %s73
      %p79 = scmp.eq.s32.totalorder %s18, 0
      %p80 = por %p78, %p79
      %p81 = scmp.ne.s32.totalorder %s70, %s73
      %p82 = scmp.eq.s32.totalorder %s23, 1
      %p83 = por %p81, %p82
      %p84 = scmp.ne.s32.totalorder %s73, %s74
      %p85 = scmp.eq.s32.totalorder %s23, 0
      %p86 = por %p84, %p85
      %p87 = scmp.ne.s32.totalorder %s73, %s74
      %p88 = scmp.eq.s32.totalorder %s24, 1
      %p89 = por %p87, %p88
      %p91 = scmp.ne.s32.totalorder %s74, %s90
      %p92 = scmp.eq.s32.totalorder %s24, 0
      %p93 = por %p91, %p92
      %s95 = sadd.s32 %s94, 1
      %p98 = scmp.eq.s32.totalorder %s18, 1
      %p99 = scmp.ne.s32.totalorder %s94, %s96
      %p100 = scmp.eq.s32.totalorder %s18, 0
      %p101 = por %p99, %p100
      %p102 = scmp.ne.s32.totalorder %s94, %s96
      %p103 = scmp.eq.s32.totalorder %s23, 1
      %p104 = por %p102, %p103
      %p105 = scmp.ne.s32.totalorder %s96, %s97
      %p106 = scmp.eq.s32.totalorder %s23, 0
      %p107 = por %p105, %p106
      %p108 = scmp.ne.s32.totalorder %s96, %s97
      %p109 = scmp.eq.s32.totalorder %s24, 1
      %p110 = por %p108, %p109
      %p112 = scmp.ne.s32.totalorder %s97, %s111
      %p113 = scmp.eq.s32.totalorder %s24, 0
      %p114 = por %p112, %p113
      %s115 = ssub.s32 %s25, %s37
      %s116 = ssub.s32 %s26, %s33
      %s117 = sor.u32 %s115, %s116
      %p118 = scmp.eq.s32.totalorder %s117, 0
      %s120 = sadd.s32 %s119, 1
      %s121 = scalar_select %p118, %s119, %s120
      %p124 = pneg %p118
      %p125 = scmp.eq.s32.totalorder %s18, 1
      %p126 = por %p124, %p125
      %p127 = scmp.ne.s32.totalorder %s119, %s122
      %p128 = scmp.eq.s32.totalorder %s18, 0
      %p129 = por %p127, %p128
      %p130 = scmp.ne.s32.totalorder %s119, %s122
      %p131 = scmp.eq.s32.totalorder %s23, 1
      %p132 = por %p130, %p131
      %p133 = scmp.ne.s32.totalorder %s122, %s123
      %p134 = scmp.eq.s32.totalorder %s23, 0
      %p135 = por %p133, %p134
      %p136 = scmp.ne.s32.totalorder %s122, %s123
      %p137 = scmp.eq.s32.totalorder %s24, 1
      %p138 = por %p136, %p137
      %p140 = scmp.ne.s32.totalorder %s123, %s139
      %p141 = scmp.eq.s32.totalorder %s24, 0
      %p142 = por %p140, %p141
      %p143 = scmp.le.s32.totalorder 1, %s18
      %p144 = scmp.lt.s32.totalorder %s18, 3
      %p145 = pnand %p143, %p144
      %p146 = pneg %p145
      // Predicated region
      $region9: #{tpu_custom_call.1} parent=5 // pred_check
        _
      $region10: #{tpu_custom_call.1} parent=5 // pred_check_branch
        %148 = sbr.rel (%p145) target = $region12
      $region11: #{tpu_custom_call.1} parent=5 // pred_region
        %s149 = ssub.s32 %s18, 1
        // Predicated region
        $region13: #{tpu_custom_call.1} parent=11 // pred_check
          %p150 = pneg %p107
        $region14: #{tpu_custom_call.1} parent=11 // pred_check_branch
          %152 = sbr.rel (%p150) target = $region16
        $region15: #{tpu_custom_call.1} parent=11 // pred_region
          %s154 = ssub.s32 6144, 6144
          %155 = vsyncadd [#allocation6], %s154
          %s156 = sshll.u32 [#allocation7], 4
          %s157 = int_to_ptr.vmem [resolvable:$true] %s156
          %162 = dma.hbm_to_vmem [thread:$0]  %s2, 6144, %s157, [#allocation6], 256, 256, 16
        $region16: #{tpu_custom_call.1} parent=11 // pred_fallthru
          _
      $region12: #{tpu_custom_call.1} parent=5 // pred_fallthru
        _
      %p163 = scmp.lt.s32.totalorder %s18, 2
      // Predicated region
      $region17: #{tpu_custom_call.1} parent=5 // pred_check
        %p164 = pneg %p163
      $region18: #{tpu_custom_call.1} parent=5 // pred_check_branch
        %166 = sbr.rel (%p164) target = $region20
      $region19: #{tpu_custom_call.1} parent=5 // pred_region
        // Predicated region
        $region21: #{tpu_custom_call.1} parent=19 // pred_check
          %p167 = pneg %p52
        $region22: #{tpu_custom_call.1} parent=19 // pred_check_branch
          %169 = sbr.rel (%p167) target = $region24
        $region23: #{tpu_custom_call.1} parent=19 // pred_region
          %s170 = sand.u32 %s42, 1
          %s171 = scalar_lea.sflag [#allocation3], %s170
          %s172 = sand.u32 %s42, 1
          %s173 = smul.addr %s172, 256
          %s174 = scalar_lea.vmem [#allocation2], %s173
          %s175 = smul.u32 16, %s26
          %s177 = ssub.s32 4096, 4096
          %178 = vsyncadd %s171, %s177
          %s179 = smul.addr %s175, 2
          %s180 = smul.addr %s25, 32
          %s181 = sadd.s32 %s179, %s180
          %s182 = smul.addr %s181, 128
          %s183 = scalar_lea.hbm %s0, %s182
          %s184 = sshll.u32 %s174, 4
          %s185 = int_to_ptr.vmem [resolvable:$true] %s184
          %190 = dma.hbm_to_vmem [thread:$0]  %s183, 4096, %s185, %s171, 128, 128, 8
        $region24: #{tpu_custom_call.1} parent=19 // pred_fallthru
          _
        // Predicated region
        $region25: #{tpu_custom_call.1} parent=19 // pred_check
          %p191 = pneg %p80
        $region26: #{tpu_custom_call.1} parent=19 // pred_check_branch
          %193 = sbr.rel (%p191) target = $region28
        $region27: #{tpu_custom_call.1} parent=19 // pred_region
          %s194 = sand.u32 %s18, 1
          %s195 = scalar_lea.sflag [#allocation6], %s194
          %s196 = sand.u32 %s70, 1
          %s197 = smul.addr %s196, 32
          %s198 = scalar_lea.vmem [#allocation5], %s197
          %s200 = ssub.s32 512, 512
          %201 = vsyncadd %s195, %s200
          %s202 = smul.addr %s26, 4
          %s203 = smul.addr %s25, 4
          %s204 = sadd.s32 %s202, %s203
          %s205 = smul.addr %s204, 128
          %s206 = scalar_lea.hbm %s1, %s205
          %s207 = sshll.u32 %s198, 4
          %s208 = int_to_ptr.vmem [resolvable:$true] %s207
          %213 = dma.hbm_to_vmem [thread:$0]  %s206, 512, %s208, %s195, 128, 128, 8
        $region28: #{tpu_custom_call.1} parent=19 // pred_fallthru
          _
      $region20: #{tpu_custom_call.1} parent=5 // pred_fallthru
        _
      %p214 = scmp.le.s32.totalorder 1, %s18
      %p215 = scmp.lt.s32.totalorder %s18, 3
      %p216 = pnand %p214, %p215
      %p217 = pneg %p216
      // Predicated region
      $region29: #{tpu_custom_call.1} parent=5 // pred_check
        _
      $region30: #{tpu_custom_call.1} parent=5 // pred_check_branch
        %219 = sbr.rel (%p216) target = $region32
      $region31: #{tpu_custom_call.1} parent=5 // pred_region
        %s220 = ssub.s32 %s18, 1
        %s221 = sand.u32 %s45, 1
        %s222 = scalar_lea.sflag [#allocation3], %s221
        %s223 = sand.u32 %s45, 1
        %s224 = smul.addr %s223, 256
        %s225 = scalar_lea.vmem [#allocation2], %s224
        // Predicated region
        $region33: #{tpu_custom_call.1} parent=31 // pred_check
          %p226 = pneg %p58
        $region34: #{tpu_custom_call.1} parent=31 // pred_check_branch
          %228 = sbr.rel (%p226) target = $region36
        $region35: #{tpu_custom_call.1} parent=31 // pred_region
          %229 = dma.done %s222, 4096
        $region36: #{tpu_custom_call.1} parent=31 // pred_fallthru
          _
        %s230 = sand.u32 %s23, 1
        %s231 = scalar_lea.sflag [#allocation6], %s230
        %s232 = sand.u32 %s73, 1
        %s233 = smul.addr %s232, 32
        %s234 = scalar_lea.vmem [#allocation5], %s233
        // Predicated region
        $region37: #{tpu_custom_call.1} parent=31 // pred_check
          %p235 = pneg %p86
        $region38: #{tpu_custom_call.1} parent=31 // pred_check_branch
          %237 = sbr.rel (%p235) target = $region40
        $region39: #{tpu_custom_call.1} parent=31 // pred_region
          %238 = dma.done %s231, 512
        $region40: #{tpu_custom_call.1} parent=31 // pred_fallthru
          _
        // Predicated region
        $region41: #{tpu_custom_call.1} parent=31 // pred_check
          %p239 = pneg %p107
        $region42: #{tpu_custom_call.1} parent=31 // pred_check_branch
          %241 = sbr.rel (%p239) target = $region44
        $region43: #{tpu_custom_call.1} parent=31 // pred_region
          %242 = dma.done [#allocation6], 6144
        $region44: #{tpu_custom_call.1} parent=31 // pred_fallthru
          _
        %s243 = sand.u32 %s45, 1
        %s244 = scalar_lea.sflag [#allocation3], %s243
        %s245 = sand.u32 %s45, 1
        %s246 = smul.addr %s245, 256
        %s247 = scalar_lea.vmem [#allocation2], %s246
        %p248 = pneg %p58
        %p249 = pneg %p55
        %s250 = sand.u32 %s23, 1
        %s251 = scalar_lea.sflag [#allocation6], %s250
        %s252 = sand.u32 %s73, 1
        %s253 = smul.addr %s252, 32
        %s254 = scalar_lea.vmem [#allocation5], %s253
        %p255 = pneg %p86
        %p256 = pneg %p83
        %p257 = pneg %p107
        %p258 = pneg %p104
        %p259 = pneg %p135
        %p260 = pneg %p132
        %s261 = sand.u32 %s122, 1
        %s262 = scalar_lea.sflag [#allocation4], %s261
        %s263 = sand.u32 %s122, 1
        %s264 = smul.addr %s263, 256
        %s265 = scalar_lea.vmem [#allocation8], %s264
        %s266 = smul.u32 16, %s28
        %s267 = smul.u32 16, %s28
        %v268 = vld [vmem:[%s234] sm:$0xff]
        %v269 = vld [vmem:[%s234 + $0x8] sm:$0xff]
        %v270 = vld [vmem:[%s225] sm:$0xff]
        %v271 = vld [vmem:[%s225 + $0x8] sm:$0xff]
        %v272 = vld [vmem:[%s225 + $0x10] sm:$0xff]
        %v273 = vld [vmem:[%s225 + $0x18] sm:$0xff]
        %v274 = vld [vmem:[%s225 + $0x20] sm:$0xff]
        %v275 = vld [vmem:[%s225 + $0x28] sm:$0xff]
        %v276 = vld [vmem:[%s225 + $0x30] sm:$0xff]
        %v277 = vld [vmem:[%s225 + $0x38] sm:$0xff]
        %v278 = vld [vmem:[%s225 + $0x40] sm:$0xff]
        %v279 = vld [vmem:[%s225 + $0x48] sm:$0xff]
        %v280 = vld [vmem:[%s225 + $0x50] sm:$0xff]
        %v281 = vld [vmem:[%s225 + $0x58] sm:$0xff]
        %v282 = vld [vmem:[%s225 + $0x60] sm:$0xff]
        %v283 = vld [vmem:[%s225 + $0x68] sm:$0xff]
        %v284 = vld [vmem:[%s225 + $0x70] sm:$0xff]
        %v285 = vld [vmem:[%s225 + $0x78] sm:$0xff]
        %v286 = vld [vmem:[%s225 + $0x80] sm:$0xff]
        %v287 = vld [vmem:[%s225 + $0x88] sm:$0xff]
        %v288 = vld [vmem:[%s225 + $0x90] sm:$0xff]
        %v289 = vld [vmem:[%s225 + $0x98] sm:$0xff]
        %v290 = vld [vmem:[%s225 + $0xa0] sm:$0xff]
        %v291 = vld [vmem:[%s225 + $0xa8] sm:$0xff]
        %v292 = vld [vmem:[%s225 + $0xb0] sm:$0xff]
        %v293 = vld [vmem:[%s225 + $0xb8] sm:$0xff]
        %v294 = vld [vmem:[%s225 + $0xc0] sm:$0xff]
        %v295 = vld [vmem:[%s225 + $0xc8] sm:$0xff]
        %v296 = vld [vmem:[%s225 + $0xd0] sm:$0xff]
        %v297 = vld [vmem:[%s225 + $0xd8] sm:$0xff]
        %v298 = vld [vmem:[%s225 + $0xe0] sm:$0xff]
        %v299 = vld [vmem:[%s225 + $0xe8] sm:$0xff]
        %v300 = vld [vmem:[%s225 + $0xf0] sm:$0xff]
        %v301 = vld [vmem:[%s225 + $0xf8] sm:$0xff]
        %s302 = scalar_lea.vmem %s234, 16 [#allocation5]
        %v303 = vld [vmem:[%s302] sm:$0xff]
        %v304 = vld [vmem:[%s302 + $0x8] sm:$0xff]
        %vm341 = vcmask 1040384
        %v342 = vrot.slane %v268, 7
        %v343 = vrot.slane %v269, 7
        %v344 = vsel %vm341, %v342, %v343
        %v345 = vrot.slane %v270, 7
        %v346 = vrot.slane %v271, 7
        %v347 = vsel %vm341, %v345, %v346
        %v348 = vrot.slane %v272, 7
        %v349 = vrot.slane %v273, 7
        %v350 = vsel %vm341, %v348, %v349
        %v351 = vrot.slane %v274, 7
        %v352 = vrot.slane %v275, 7
        %v353 = vsel %vm341, %v351, %v352
        %v354 = vrot.slane %v276, 7
        %v355 = vrot.slane %v277, 7
        %v356 = vsel %vm341, %v354, %v355
        %v357 = vrot.slane %v278, 7
        %v358 = vrot.slane %v279, 7
        %v359 = vsel %vm341, %v357, %v358
        %v360 = vrot.slane %v280, 7
        %v361 = vrot.slane %v281, 7
        %v362 = vsel %vm341, %v360, %v361
        %v363 = vrot.slane %v282, 7
        %v364 = vrot.slane %v283, 7
        %v365 = vsel %vm341, %v363, %v364
        %v366 = vrot.slane %v284, 7
        %v367 = vrot.slane %v285, 7
        %v368 = vsel %vm341, %v366, %v367
        %v369 = vrot.slane %v286, 7
        %v370 = vrot.slane %v287, 7
        %v371 = vsel %vm341, %v369, %v370
        %v372 = vrot.slane %v288, 7
        %v373 = vrot.slane %v289, 7
        %v374 = vsel %vm341, %v372, %v373
        %v375 = vrot.slane %v290, 7
        %v376 = vrot.slane %v291, 7
        %v377 = vsel %vm341, %v375, %v376
        %v378 = vrot.slane %v292, 7
        %v379 = vrot.slane %v293, 7
        %v380 = vsel %vm341, %v378, %v379
        %v381 = vrot.slane %v294, 7
        %v382 = vrot.slane %v295, 7
        %v383 = vsel %vm341, %v381, %v382
        %v384 = vrot.slane %v296, 7
        %v385 = vrot.slane %v297, 7
        %v386 = vsel %vm341, %v384, %v385
        %v387 = vrot.slane %v298, 7
        %v388 = vrot.slane %v299, 7
        %v389 = vsel %vm341, %v387, %v388
        %v390 = vrot.slane %v300, 7
        %v391 = vrot.slane %v301, 7
        %v392 = vsel %vm341, %v390, %v391
        %v393 = vrot.slane %v303, 7
        %v394 = vrot.slane %v304, 7
        %v395 = vsel %vm341, %v393, %v394
        %v448 = vsel %vm341, 0.0, %v342
        %v449 = vsel %vm341, 0.0, %v345
        %v450 = vsel %vm341, 0.0, %v348
        %v451 = vsel %vm341, 0.0, %v351
        %v452 = vsel %vm341, 0.0, %v354
        %v453 = vsel %vm341, 0.0, %v357
        %v454 = vsel %vm341, 0.0, %v360
        %v455 = vsel %vm341, 0.0, %v363
        %v456 = vsel %vm341, 0.0, %v366
        %v457 = vsel %vm341, 0.0, %v369
        %v458 = vsel %vm341, 0.0, %v372
        %v459 = vsel %vm341, 0.0, %v375
        %v460 = vsel %vm341, 0.0, %v378
        %v461 = vsel %vm341, 0.0, %v381
        %v462 = vsel %vm341, 0.0, %v384
        %v463 = vsel %vm341, 0.0, %v387
        %v464 = vsel %vm341, 0.0, %v390
        %v465 = vsel %vm341, 0.0, %v393
        %v466 = vsel %vm341, %v343, 0.0
        %v467 = vsel %vm341, %v346, 0.0
        %v468 = vsel %vm341, %v349, 0.0
        %v469 = vsel %vm341, %v352, 0.0
        %v470 = vsel %vm341, %v355, 0.0
        %v471 = vsel %vm341, %v358, 0.0
        %v472 = vsel %vm341, %v361, 0.0
        %v473 = vsel %vm341, %v364, 0.0
        %v474 = vsel %vm341, %v367, 0.0
        %v475 = vsel %vm341, %v370, 0.0
        %v476 = vsel %vm341, %v373, 0.0
        %v477 = vsel %vm341, %v376, 0.0
        %v478 = vsel %vm341, %v379, 0.0
        %v479 = vsel %vm341, %v382, 0.0
        %v480 = vsel %vm341, %v385, 0.0
        %v481 = vsel %vm341, %v388, 0.0
        %v482 = vsel %vm341, %v391, 0.0
        %v483 = vsel %vm341, %v394, 0.0
        %516 = vrot.lane.b32.xlu0 %v449, 64
        %v517 = vpop.permute.xlu0 %516
        %518 = vrot.lane.b32.xlu0 %v347, 64
        %v519 = vpop.permute.xlu0 %518
        %520 = vrot.lane.b32.xlu0 %v467, 64
        %v521 = vpop.permute.xlu0 %520
        %522 = vrot.lane.b32.xlu0 %v450, 64
        %v523 = vpop.permute.xlu0 %522
        %524 = vrot.lane.b32.xlu0 %v350, 64
        %v525 = vpop.permute.xlu0 %524
        %526 = vrot.lane.b32.xlu0 %v468, 64
        %v527 = vpop.permute.xlu0 %526
        %528 = vrot.lane.b32.xlu0 %v451, 64
        %v529 = vpop.permute.xlu0 %528
        %530 = vrot.lane.b32.xlu0 %v353, 64
        %v531 = vpop.permute.xlu0 %530
        %532 = vrot.lane.b32.xlu0 %v469, 64
        %v533 = vpop.permute.xlu0 %532
        %534 = vrot.lane.b32.xlu0 %v452, 64
        %v535 = vpop.permute.xlu0 %534
        %536 = vrot.lane.b32.xlu0 %v356, 64
        %v537 = vpop.permute.xlu0 %536
        %538 = vrot.lane.b32.xlu0 %v470, 64
        %v539 = vpop.permute.xlu0 %538
        %540 = vrot.lane.b32.xlu0 %v453, 64
        %v541 = vpop.permute.xlu0 %540
        %542 = vrot.lane.b32.xlu0 %v359, 64
        %v543 = vpop.permute.xlu0 %542
        %544 = vrot.lane.b32.xlu0 %v471, 64
        %v545 = vpop.permute.xlu0 %544
        %546 = vrot.lane.b32.xlu0 %v454, 64
        %v547 = vpop.permute.xlu0 %546
        %548 = vrot.lane.b32.xlu0 %v362, 64
        %v549 = vpop.permute.xlu0 %548
        %550 = vrot.lane.b32.xlu0 %v472, 64
        %v551 = vpop.permute.xlu0 %550
        %552 = vrot.lane.b32.xlu0 %v455, 64
        %v553 = vpop.permute.xlu0 %552
        %554 = vrot.lane.b32.xlu0 %v365, 64
        %v555 = vpop.permute.xlu0 %554
        %556 = vrot.lane.b32.xlu0 %v473, 64
        %v557 = vpop.permute.xlu0 %556
        %558 = vrot.lane.b32.xlu0 %v456, 64
        %v559 = vpop.permute.xlu0 %558
        %560 = vrot.lane.b32.xlu0 %v368, 64
        %v561 = vpop.permute.xlu0 %560
        %562 = vrot.lane.b32.xlu0 %v474, 64
        %v563 = vpop.permute.xlu0 %562
        %564 = vrot.lane.b32.xlu0 %v457, 64
        %v565 = vpop.permute.xlu0 %564
        %566 = vrot.lane.b32.xlu0 %v371, 64
        %v567 = vpop.permute.xlu0 %566
        %568 = vrot.lane.b32.xlu0 %v475, 64
        %v569 = vpop.permute.xlu0 %568
        %570 = vrot.lane.b32.xlu0 %v458, 64
        %v571 = vpop.permute.xlu0 %570
        %572 = vrot.lane.b32.xlu0 %v374, 64
        %v573 = vpop.permute.xlu0 %572
        %574 = vrot.lane.b32.xlu0 %v476, 64
        %v575 = vpop.permute.xlu0 %574
        %576 = vrot.lane.b32.xlu0 %v459, 64
        %v577 = vpop.permute.xlu0 %576
        %578 = vrot.lane.b32.xlu0 %v377, 64
        %v579 = vpop.permute.xlu0 %578
        %580 = vrot.lane.b32.xlu0 %v477, 64
        %v581 = vpop.permute.xlu0 %580
        %582 = vrot.lane.b32.xlu0 %v460, 64
        %v583 = vpop.permute.xlu0 %582
        %584 = vrot.lane.b32.xlu0 %v380, 64
        %v585 = vpop.permute.xlu0 %584
        %586 = vrot.lane.b32.xlu0 %v478, 64
        %v587 = vpop.permute.xlu0 %586
        %588 = vrot.lane.b32.xlu0 %v461, 64
        %v589 = vpop.permute.xlu0 %588
        %590 = vrot.lane.b32.xlu0 %v383, 64
        %v591 = vpop.permute.xlu0 %590
        %592 = vrot.lane.b32.xlu0 %v479, 64
        %v593 = vpop.permute.xlu0 %592
        %594 = vrot.lane.b32.xlu0 %v462, 64
        %v595 = vpop.permute.xlu0 %594
        %596 = vrot.lane.b32.xlu0 %v386, 64
        %v597 = vpop.permute.xlu0 %596
        %598 = vrot.lane.b32.xlu0 %v480, 64
        %v599 = vpop.permute.xlu0 %598
        %600 = vrot.lane.b32.xlu0 %v463, 64
        %v601 = vpop.permute.xlu0 %600
        %602 = vrot.lane.b32.xlu0 %v389, 64
        %v603 = vpop.permute.xlu0 %602
        %604 = vrot.lane.b32.xlu0 %v481, 64
        %v605 = vpop.permute.xlu0 %604
        %606 = vrot.lane.b32.xlu0 %v464, 64
        %v607 = vpop.permute.xlu0 %606
        %608 = vrot.lane.b32.xlu0 %v392, 64
        %v609 = vpop.permute.xlu0 %608
        %610 = vrot.lane.b32.xlu0 %v482, 64
        %v611 = vpop.permute.xlu0 %610
        %vm660 = vcmask 523264
        %v661 = vsel %vm660, %v448, %v517
        %v662 = vsel %vm660, %v344, %v519
        %v663 = vsel %vm660, %v466, %v521
        %v664 = vsel %vm660, %v449, %v523
        %v665 = vsel %vm660, %v347, %v525
        %v666 = vsel %vm660, %v467, %v527
        %v667 = vsel %vm660, %v450, %v529
        %v668 = vsel %vm660, %v350, %v531
        %v669 = vsel %vm660, %v468, %v533
        %v670 = vsel %vm660, %v451, %v535
        %v671 = vsel %vm660, %v353, %v537
        %v672 = vsel %vm660, %v469, %v539
        %v673 = vsel %vm660, %v452, %v541
        %v674 = vsel %vm660, %v356, %v543
        %v675 = vsel %vm660, %v470, %v545
        %v676 = vsel %vm660, %v453, %v547
        %v677 = vsel %vm660, %v359, %v549
        %v678 = vsel %vm660, %v471, %v551
        %v679 = vsel %vm660, %v454, %v553
        %v680 = vsel %vm660, %v362, %v555
        %v681 = vsel %vm660, %v472, %v557
        %v682 = vsel %vm660, %v455, %v559
        %v683 = vsel %vm660, %v365, %v561
        %v684 = vsel %vm660, %v473, %v563
        %v685 = vsel %vm660, %v456, %v565
        %v686 = vsel %vm660, %v368, %v567
        %v687 = vsel %vm660, %v474, %v569
        %v688 = vsel %vm660, %v457, %v571
        %v689 = vsel %vm660, %v371, %v573
        %v690 = vsel %vm660, %v475, %v575
        %v691 = vsel %vm660, %v458, %v577
        %v692 = vsel %vm660, %v374, %v579
        %v693 = vsel %vm660, %v476, %v581
        %v694 = vsel %vm660, %v459, %v583
        %v695 = vsel %vm660, %v377, %v585
        %v696 = vsel %vm660, %v477, %v587
        %v697 = vsel %vm660, %v460, %v589
        %v698 = vsel %vm660, %v380, %v591
        %v699 = vsel %vm660, %v478, %v593
        %v700 = vsel %vm660, %v461, %v595
        %v701 = vsel %vm660, %v383, %v597
        %v702 = vsel %vm660, %v479, %v599
        %v703 = vsel %vm660, %v462, %v601
        %v704 = vsel %vm660, %v386, %v603
        %v705 = vsel %vm660, %v480, %v605
        %v706 = vsel %vm660, %v463, %v607
        %v707 = vsel %vm660, %v389, %v609
        %v708 = vsel %vm660, %v481, %v611
        %v709 = vld [vmem:[#allocation7] sm:$0xff]
        %v710 = vld [vmem:[#allocation7 + $0x8] sm:$0xff]
        %v711 = vld [vmem:[#allocation7 + $0x10] sm:$0xff]
        %v712 = vld [vmem:[#allocation7 + $0x18] sm:$0xff]
        %v713 = vld [vmem:[#allocation7 + $0x20] sm:$0xff]
        %v714 = vld [vmem:[#allocation7 + $0x28] sm:$0xff]
        %v715 = vld [vmem:[#allocation7 + $0x30] sm:$0xff]
        %v716 = vld [vmem:[#allocation7 + $0x38] sm:$0xff]
        %v717 = vld [vmem:[#allocation7 + $0x40] sm:$0xff]
        %v718 = vld [vmem:[#allocation7 + $0x48] sm:$0xff]
        %v719 = vld [vmem:[#allocation7 + $0x50] sm:$0xff]
        %v720 = vld [vmem:[#allocation7 + $0x58] sm:$0xff]
        %v721 = vld [vmem:[#allocation7 + $0x60] sm:$0xff]
        %v722 = vld [vmem:[#allocation7 + $0x68] sm:$0xff]
        %v723 = vld [vmem:[#allocation7 + $0x70] sm:$0xff]
        %v724 = vld [vmem:[#allocation7 + $0x78] sm:$0xff]
        %v725 = vld [vmem:[#allocation7 + $0x80] sm:$0xff]
        %v726 = vld [vmem:[#allocation7 + $0x88] sm:$0xff]
        %v727 = vld [vmem:[#allocation7 + $0x90] sm:$0xff]
        %v728 = vld [vmem:[#allocation7 + $0x98] sm:$0xff]
        %v729 = vld [vmem:[#allocation7 + $0xa0] sm:$0xff]
        %v730 = vld [vmem:[#allocation7 + $0xa8] sm:$0xff]
        %v731 = vld [vmem:[#allocation7 + $0xb0] sm:$0xff]
        %v732 = vld [vmem:[#allocation7 + $0xb8] sm:$0xff]
        %v733 = vld [vmem:[#allocation7 + $0xc0] sm:$0xff]
        %v734 = vld [vmem:[#allocation7 + $0xc8] sm:$0xff]
        %v735 = vld [vmem:[#allocation7 + $0xd0] sm:$0xff]
        %v736 = vld [vmem:[#allocation7 + $0xd8] sm:$0xff]
        %v737 = vld [vmem:[#allocation7 + $0xe0] sm:$0xff]
        %v738 = vld [vmem:[#allocation7 + $0xe8] sm:$0xff]
        %v739 = vld [vmem:[#allocation7 + $0xf0] sm:$0xff]
        %v740 = vld [vmem:[#allocation7 + $0xf8] sm:$0xff]
        %v741 = vld [vmem:[#allocation7 + $0x100] sm:$0xff]
        %v742 = vld [vmem:[#allocation7 + $0x108] sm:$0xff]
        %v743 = vld [vmem:[#allocation7 + $0x110] sm:$0xff]
        %v744 = vld [vmem:[#allocation7 + $0x118] sm:$0xff]
        %v745 = vld [vmem:[#allocation7 + $0x120] sm:$0xff]
        %v746 = vld [vmem:[#allocation7 + $0x128] sm:$0xff]
        %v747 = vld [vmem:[#allocation7 + $0x130] sm:$0xff]
        %v748 = vld [vmem:[#allocation7 + $0x138] sm:$0xff]
        %v749 = vld [vmem:[#allocation7 + $0x140] sm:$0xff]
        %v750 = vld [vmem:[#allocation7 + $0x148] sm:$0xff]
        %v751 = vld [vmem:[#allocation7 + $0x150] sm:$0xff]
        %v752 = vld [vmem:[#allocation7 + $0x158] sm:$0xff]
        %v753 = vld [vmem:[#allocation7 + $0x160] sm:$0xff]
        %v754 = vld [vmem:[#allocation7 + $0x168] sm:$0xff]
        %v755 = vld [vmem:[#allocation7 + $0x170] sm:$0xff]
        %v756 = vld [vmem:[#allocation7 + $0x178] sm:$0xff]
        %v757 = vsel %vm660, %v450, 0
        %v759 = vsel %vm660, %v350, 0
        %v761 = vsel %vm660, %v468, 0
        %v763 = vsel %vm660, %v451, 0
        %v765 = vsel %vm660, %v353, 0
        %v767 = vsel %vm660, %v469, 0
        %v769 = vsel %vm660, %v452, 0
        %v771 = vsel %vm660, %v356, 0
        %v773 = vsel %vm660, %v470, 0
        %v775 = vsel %vm660, %v453, 0
        %v777 = vsel %vm660, %v359, 0
        %v779 = vsel %vm660, %v471, 0
        %v781 = vsel %vm660, %v454, 0
        %v783 = vsel %vm660, %v362, 0
        %v785 = vsel %vm660, %v472, 0
        %v787 = vsel %vm660, %v455, 0
        %v789 = vsel %vm660, %v365, 0
        %v791 = vsel %vm660, %v473, 0
        %v793 = vsel %vm660, %v456, 0
        %v795 = vsel %vm660, %v368, 0
        %v797 = vsel %vm660, %v474, 0
        %v799 = vsel %vm660, %v457, 0
        %v801 = vsel %vm660, %v371, 0
        %v803 = vsel %vm660, %v475, 0
        %v805 = vsel %vm660, %v458, 0
        %v807 = vsel %vm660, %v374, 0
        %v809 = vsel %vm660, %v476, 0
        %v811 = vsel %vm660, %v459, 0
        %v813 = vsel %vm660, %v377, 0
        %v815 = vsel %vm660, %v477, 0
        %v817 = vsel %vm660, %v460, 0
        %v819 = vsel %vm660, %v380, 0
        %v821 = vsel %vm660, %v478, 0
        %v823 = vsel %vm660, %v461, 0
        %v825 = vsel %vm660, %v383, 0
        %v827 = vsel %vm660, %v479, 0
        %v829 = vsel %vm660, %v462, 0
        %v831 = vsel %vm660, %v386, 0
        %v833 = vsel %vm660, %v480, 0
        %v835 = vsel %vm660, %v463, 0
        %v837 = vsel %vm660, %v389, 0
        %v839 = vsel %vm660, %v481, 0
        %v841 = vsel %vm660, %v464, 0
        %v843 = vsel %vm660, %v392, 0
        %v845 = vsel %vm660, %v482, 0
        %v848 = vsel %vm660, %v465, 0
        %v850 = vsel %vm660, %v395, 0
        %v853 = vsel %vm660, %v483, 0
        %855 = vmatprep.subr.mxu0 %v710
        %856 = vmatpush1.msra.mxu0 %v709
        %857 = vmatprep.subr.mxu0 %v712
        %858 = vmatpush1.msra.mxu0 %v711
        %859 = vmatprep.subr.mxu0 %v714
        %860 = vmatpush1.msra.mxu0 %v713
        %861 = vmatprep.subr.mxu0 %v716
        %862 = vmatpush1.msra.mxu0 %v715
        %863 = vmatprep.subr.mxu0 %v718
        %864 = vmatpush1.msra.mxu0 %v717
        %865 = vmatprep.subr.mxu0 %v720
        %866 = vmatpush1.msra.mxu0 %v719
        %867 = vmatprep.subr.mxu0 %v722
        %868 = vmatpush1.msra.mxu0 %v721
        %869 = vmatprep.subr.mxu0 %v724
        %870 = vmatpush1.msra.mxu0 %v723
        %871 = vmatprep.subr.mxu0 %v726
        %872 = vmatpush1.msra.mxu0 %v725
        %873 = vmatprep.subr.mxu0 %v728
        %874 = vmatpush1.msra.mxu0 %v727
        %875 = vmatprep.subr.mxu0 %v730
        %876 = vmatpush1.msra.mxu0 %v729
        %877 = vmatprep.subr.mxu0 %v732
        %878 = vmatpush1.msra.mxu0 %v731
        %879 = vmatprep.subr.mxu0 %v734
        %880 = vmatpush1.msra.mxu0 %v733
        %881 = vmatprep.subr.mxu0 %v736
        %882 = vmatpush1.msra.mxu0 %v735
        %883 = vmatprep.subr.mxu0 %v738
        %884 = vmatpush1.msra.mxu0 %v737
        %885 = vmatprep.subr.mxu0 %v740
        %886 = vmatpush1.msra.mxu0 %v739
        %887 = vmatprep.subr.mxu0 %v742
        %888 = vmatpush1.msra.mxu0 %v741
        %889 = vmatprep.subr.mxu0 %v744
        %890 = vmatpush1.msra.mxu0 %v743
        %891 = vmatprep.subr.mxu0 %v746
        %892 = vmatpush1.msra.mxu0 %v745
        %893 = vmatprep.subr.mxu0 %v748
        %894 = vmatpush1.msra.mxu0 %v747
        %895 = vmatprep.subr.mxu0 %v750
        %896 = vmatpush1.msra.mxu0 %v749
        %897 = vmatprep.subr.mxu0 %v752
        %898 = vmatpush1.msra.mxu0 %v751
        %899 = vmatprep.subr.mxu0 %v754
        %900 = vmatpush1.msra.mxu0 %v753
        %901 = vmatprep.subr.mxu0 %v756
        %902 = vmatpush1.msra.mxu0 %v755
        %903 = vmatprep.subr.mxu0 0.0
        %904 = vmatpush1.msra.mxu0 0.0
        %905 = vmatprep.subr.mxu0 0.0
        %906 = vmatpush1.msra.mxu0 0.0
        %907 = vmatprep.subr.mxu0 0.0
        %908 = vmatpush1.msra.mxu0 0.0
        %909 = vmatprep.subr.mxu0 0.0
        %910 = vmatpush1.msra.mxu0 0.0
        %911 = vmatprep.subr.mxu0 0.0
        %912 = vmatpush1.msra.mxu0 0.0
        %913 = vmatprep.subr.mxu0 0.0
        %914 = vmatpush1.msra.mxu0 0.0
        %915 = vmatprep.subr.mxu0 0.0
        %916 = vmatpush1.msra.mxu0 0.0
        %917 = vmatprep.subr.mxu0 0.0
        %918 = vmatpush1.msra.mxu0 0.0
        %919 = vmatprep.mubr.f32.mxu0 %v757
        %920 = vmatmul.mubr.f32.gmra.mrb[0].mxu0 %v661
        %v921 = vpop.f32.mrb[0].mxu0
        %v922 = vadd.f32 0.0, %v921
        %v923 = vpop.f32.mrb[0].mxu0
        %v924 = vadd.f32 0.0, %v923
        %925 = vmatprep.mubr.f32.mxu0 %v759
        %926 = vmatmul.mubr.f32.gmra.mrb[0].mxu0 %v662
        %v927 = vpop.f32.mrb[0].mxu0
        %v928 = vadd.f32 0.0, %v927
        %v929 = vpop.f32.mrb[0].mxu0
        %v930 = vadd.f32 0.0, %v929
        %931 = vmatprep.mubr.f32.mxu0 %v761
        %932 = vmatmul.mubr.f32.gmra.mrb[0].mxu0 %v663
        %v933 = vpop.f32.mrb[0].mxu0
        %v934 = vadd.f32 0.0, %v933
        %v935 = vpop.f32.mrb[0].mxu0
        %v936 = vadd.f32 0.0, %v935
        %937 = vmatprep.mubr.f32.mxu0 %v763
        %938 = vmatmul.mubr.f32.gmra.mrb[0].mxu0 %v664
        %v939 = vpop.f32.mrb[0].mxu0
        %v940 = vadd.f32 0.0, %v939
        %v941 = vpop.f32.mrb[0].mxu0
        %v942 = vadd.f32 0.0, %v941
        %943 = vmatprep.mubr.f32.mxu0 %v765
        %944 = vmatmul.mubr.f32.gmra.mrb[0].mxu0 %v665
        %v945 = vpop.f32.mrb[0].mxu0
        %v946 = vadd.f32 0.0, %v945
        %v947 = vpop.f32.mrb[0].mxu0
        %v948 = vadd.f32 0.0, %v947
        %949 = vmatprep.mubr.f32.mxu0 %v767
        %950 = vmatmul.mubr.f32.gmra.mrb[0].mxu0 %v666
        %v951 = vpop.f32.mrb[0].mxu0
        %v952 = vadd.f32 0.0, %v951
        %v953 = vpop.f32.mrb[0].mxu0
        %v954 = vadd.f32 0.0, %v953
        %955 = vmatprep.mubr.f32.mxu0 %v769
        %956 = vmatmul.mubr.f32.gmra.mrb[0].mxu0 %v667
        %v957 = vpop.f32.mrb[0].mxu0
        %v958 = vadd.f32 0.0, %v957
        %v959 = vpop.f32.mrb[0].mxu0
        %v960 = vadd.f32 0.0, %v959
        %961 = vmatprep.mubr.f32.mxu0 %v771
        %962 = vmatmul.mubr.f32.gmra.mrb[0].mxu0 %v668
        %v963 = vpop.f32.mrb[0].mxu0
        %v964 = vadd.f32 0.0, %v963
        %v965 = vpop.f32.mrb[0].mxu0
        %v966 = vadd.f32 0.0, %v965
        %967 = vmatprep.mubr.f32.mxu0 %v773
        %968 = vmatmul.mubr.f32.gmra.mrb[0].mxu0 %v669
        %v969 = vpop.f32.mrb[0].mxu0
        %v970 = vadd.f32 0.0, %v969
        %v971 = vpop.f32.mrb[0].mxu0
        %v972 = vadd.f32 0.0, %v971
        %973 = vmatprep.mubr.f32.mxu0 %v775
        %974 = vmatmul.mubr.f32.gmra.mrb[0].mxu0 %v670
        %v975 = vpop.f32.mrb[0].mxu0
        %v976 = vadd.f32 0.0, %v975
        %v977 = vpop.f32.mrb[0].mxu0
        %v978 = vadd.f32 0.0, %v977
        %979 = vmatprep.mubr.f32.mxu0 %v777
        %980 = vmatmul.mubr.f32.gmra.mrb[0].mxu0 %v671
        %v981 = vpop.f32.mrb[0].mxu0
        %v982 = vadd.f32 0.0, %v981
        %v983 = vpop.f32.mrb[0].mxu0
        %v984 = vadd.f32 0.0, %v983
        %985 = vmatprep.mubr.f32.mxu0 %v779
        %986 = vmatmul.mubr.f32.gmra.mrb[0].mxu0 %v672
        %v987 = vpop.f32.mrb[0].mxu0
        %v988 = vadd.f32 0.0, %v987
        %v989 = vpop.f32.mrb[0].mxu0
        %v990 = vadd.f32 0.0, %v989
        %991 = vmatprep.mubr.f32.mxu0 %v781
        %992 = vmatmul.mubr.f32.gmra.mrb[0].mxu0 %v673
        %v993 = vpop.f32.mrb[0].mxu0
        %v994 = vadd.f32 0.0, %v993
        %v995 = vpop.f32.mrb[0].mxu0
        %v996 = vadd.f32 0.0, %v995
        %997 = vmatprep.mubr.f32.mxu0 %v783
        %998 = vmatmul.mubr.f32.gmra.mrb[0].mxu0 %v674
        %v999 = vpop.f32.mrb[0].mxu0
        %v1000 = vadd.f32 0.0, %v999
        %v1001 = vpop.f32.mrb[0].mxu0
        %v1002 = vadd.f32 0.0, %v1001
        %1003 = vmatprep.mubr.f32.mxu0 %v785
        %1004 = vmatmul.mubr.f32.gmra.mrb[0].mxu0 %v675
        %v1005 = vpop.f32.mrb[0].mxu0
        %v1006 = vadd.f32 0.0, %v1005
        %v1007 = vpop.f32.mrb[0].mxu0
        %v1008 = vadd.f32 0.0, %v1007
        %1009 = vmatprep.mubr.f32.mxu0 %v787
        %1010 = vmatmul.mubr.f32.gmra.mrb[0].mxu0 %v676
        %v1011 = vpop.f32.mrb[0].mxu0
        %v1012 = vadd.f32 0.0, %v1011
        %v1013 = vpop.f32.mrb[0].mxu0
        %v1014 = vadd.f32 0.0, %v1013
        %1015 = vmatprep.mubr.f32.mxu0 %v789
        %1016 = vmatmul.mubr.f32.gmra.mrb[0].mxu0 %v677
        %v1017 = vpop.f32.mrb[0].mxu0
        %v1018 = vadd.f32 0.0, %v1017
        %v1019 = vpop.f32.mrb[0].mxu0
        %v1020 = vadd.f32 0.0, %v1019
        %1021 = vmatprep.mubr.f32.mxu0 %v791
        %1022 = vmatmul.mubr.f32.gmra.mrb[0].mxu0 %v678
        %v1023 = vpop.f32.mrb[0].mxu0
        %v1024 = vadd.f32 0.0, %v1023
        %v1025 = vpop.f32.mrb[0].mxu0
        %v1026 = vadd.f32 0.0, %v1025
        %1027 = vmatprep.mubr.f32.mxu0 %v793
        %1028 = vmatmul.mubr.f32.gmra.mrb[0].mxu0 %v679
        %v1029 = vpop.f32.mrb[0].mxu0
        %v1030 = vadd.f32 0.0, %v1029
        %v1031 = vpop.f32.mrb[0].mxu0
        %v1032 = vadd.f32 0.0, %v1031
        %1033 = vmatprep.mubr.f32.mxu0 %v795
        %1034 = vmatmul.mubr.f32.gmra.mrb[0].mxu0 %v680
        %v1035 = vpop.f32.mrb[0].mxu0
        %v1036 = vadd.f32 0.0, %v1035
        %v1037 = vpop.f32.mrb[0].mxu0
        %v1038 = vadd.f32 0.0, %v1037
        %1039 = vmatprep.mubr.f32.mxu0 %v797
        %1040 = vmatmul.mubr.f32.gmra.mrb[0].mxu0 %v681
        %v1041 = vpop.f32.mrb[0].mxu0
        %v1042 = vadd.f32 0.0, %v1041
        %v1043 = vpop.f32.mrb[0].mxu0
        %v1044 = vadd.f32 0.0, %v1043
        %1045 = vmatprep.mubr.f32.mxu0 %v799
        %1046 = vmatmul.mubr.f32.gmra.mrb[0].mxu0 %v682
        %v1047 = vpop.f32.mrb[0].mxu0
        %v1048 = vadd.f32 0.0, %v1047
        %v1049 = vpop.f32.mrb[0].mxu0
        %v1050 = vadd.f32 0.0, %v1049
        %1051 = vmatprep.mubr.f32.mxu0 %v801
        %1052 = vmatmul.mubr.f32.gmra.mrb[0].mxu0 %v683
        %v1053 = vpop.f32.mrb[0].mxu0
        %v1054 = vadd.f32 0.0, %v1053
        %v1055 = vpop.f32.mrb[0].mxu0
        %v1056 = vadd.f32 0.0, %v1055
        %1057 = vmatprep.mubr.f32.mxu0 %v803
        %1058 = vmatmul.mubr.f32.gmra.mrb[0].mxu0 %v684
        %v1059 = vpop.f32.mrb[0].mxu0
        %v1060 = vadd.f32 0.0, %v1059
        %v1061 = vpop.f32.mrb[0].mxu0
        %v1062 = vadd.f32 0.0, %v1061
        %1063 = vmatprep.mubr.f32.mxu0 %v805
        %1064 = vmatmul.mubr.f32.gmra.mrb[0].mxu0 %v685
        %v1065 = vpop.f32.mrb[0].mxu0
        %v1066 = vadd.f32 0.0, %v1065
        %v1067 = vpop.f32.mrb[0].mxu0
        %v1068 = vadd.f32 0.0, %v1067
        %1069 = vmatprep.mubr.f32.mxu0 %v807
        %1070 = vmatmul.mubr.f32.gmra.mrb[0].mxu0 %v686
        %v1071 = vpop.f32.mrb[0].mxu0
        %v1072 = vadd.f32 0.0, %v1071
        %v1073 = vpop.f32.mrb[0].mxu0
        %v1074 = vadd.f32 0.0, %v1073
        %1075 = vmatprep.mubr.f32.mxu0 %v809
        %1076 = vmatmul.mubr.f32.gmra.mrb[0].mxu0 %v687
        %v1077 = vpop.f32.mrb[0].mxu0
        %v1078 = vadd.f32 0.0, %v1077
        %v1079 = vpop.f32.mrb[0].mxu0
        %v1080 = vadd.f32 0.0, %v1079
        %1081 = vmatprep.mubr.f32.mxu0 %v811
        %1082 = vmatmul.mubr.f32.gmra.mrb[0].mxu0 %v688
        %v1083 = vpop.f32.mrb[0].mxu0
        %v1084 = vadd.f32 0.0, %v1083
        %v1085 = vpop.f32.mrb[0].mxu0
        %v1086 = vadd.f32 0.0, %v1085
        %1087 = vmatprep.mubr.f32.mxu0 %v813
        %1088 = vmatmul.mubr.f32.gmra.mrb[0].mxu0 %v689
        %v1089 = vpop.f32.mrb[0].mxu0
        %v1090 = vadd.f32 0.0, %v1089
        %v1091 = vpop.f32.mrb[0].mxu0
        %v1092 = vadd.f32 0.0, %v1091
        %1093 = vmatprep.mubr.f32.mxu0 %v815
        %1094 = vmatmul.mubr.f32.gmra.mrb[0].mxu0 %v690
        %v1095 = vpop.f32.mrb[0].mxu0
        %v1096 = vadd.f32 0.0, %v1095
        %v1097 = vpop.f32.mrb[0].mxu0
        %v1098 = vadd.f32 0.0, %v1097
        %1099 = vmatprep.mubr.f32.mxu0 %v817
        %1100 = vmatmul.mubr.f32.gmra.mrb[0].mxu0 %v691
        %v1101 = vpop.f32.mrb[0].mxu0
        %v1102 = vadd.f32 0.0, %v1101
        %v1103 = vpop.f32.mrb[0].mxu0
        %v1104 = vadd.f32 0.0, %v1103
        %1105 = vmatprep.mubr.f32.mxu0 %v819
        %1106 = vmatmul.mubr.f32.gmra.mrb[0].mxu0 %v692
        %v1107 = vpop.f32.mrb[0].mxu0
        %v1108 = vadd.f32 0.0, %v1107
        %v1109 = vpop.f32.mrb[0].mxu0
        %v1110 = vadd.f32 0.0, %v1109
        %1111 = vmatprep.mubr.f32.mxu0 %v821
        %1112 = vmatmul.mubr.f32.gmra.mrb[0].mxu0 %v693
        %v1113 = vpop.f32.mrb[0].mxu0
        %v1114 = vadd.f32 0.0, %v1113
        %v1115 = vpop.f32.mrb[0].mxu0
        %v1116 = vadd.f32 0.0, %v1115
        %1117 = vmatprep.mubr.f32.mxu0 %v823
        %1118 = vmatmul.mubr.f32.gmra.mrb[0].mxu0 %v694
        %v1119 = vpop.f32.mrb[0].mxu0
        %v1120 = vadd.f32 0.0, %v1119
        %v1121 = vpop.f32.mrb[0].mxu0
        %v1122 = vadd.f32 0.0, %v1121
        %1123 = vmatprep.mubr.f32.mxu0 %v825
        %1124 = vmatmul.mubr.f32.gmra.mrb[0].mxu0 %v695
        %v1125 = vpop.f32.mrb[0].mxu0
        %v1126 = vadd.f32 0.0, %v1125
        %v1127 = vpop.f32.mrb[0].mxu0
        %v1128 = vadd.f32 0.0, %v1127
        %1129 = vmatprep.mubr.f32.mxu0 %v827
        %1130 = vmatmul.mubr.f32.gmra.mrb[0].mxu0 %v696
        %v1131 = vpop.f32.mrb[0].mxu0
        %v1132 = vadd.f32 0.0, %v1131
        %v1133 = vpop.f32.mrb[0].mxu0
        %v1134 = vadd.f32 0.0, %v1133
        %1135 = vmatprep.mubr.f32.mxu0 %v829
        %1136 = vmatmul.mubr.f32.gmra.mrb[0].mxu0 %v697
        %v1137 = vpop.f32.mrb[0].mxu0
        %v1138 = vadd.f32 0.0, %v1137
        %v1139 = vpop.f32.mrb[0].mxu0
        %v1140 = vadd.f32 0.0, %v1139
        %1141 = vmatprep.mubr.f32.mxu0 %v831
        %1142 = vmatmul.mubr.f32.gmra.mrb[0].mxu0 %v698
        %v1143 = vpop.f32.mrb[0].mxu0
        %v1144 = vadd.f32 0.0, %v1143
        %v1145 = vpop.f32.mrb[0].mxu0
        %v1146 = vadd.f32 0.0, %v1145
        %1147 = vmatprep.mubr.f32.mxu0 %v833
        %1148 = vmatmul.mubr.f32.gmra.mrb[0].mxu0 %v699
        %v1149 = vpop.f32.mrb[0].mxu0
        %v1150 = vadd.f32 0.0, %v1149
        %v1151 = vpop.f32.mrb[0].mxu0
        %v1152 = vadd.f32 0.0, %v1151
        %1153 = vmatprep.mubr.f32.mxu0 %v835
        %1154 = vmatmul.mubr.f32.gmra.mrb[0].mxu0 %v700
        %v1155 = vpop.f32.mrb[0].mxu0
        %v1156 = vadd.f32 0.0, %v1155
        %v1157 = vpop.f32.mrb[0].mxu0
        %v1158 = vadd.f32 0.0, %v1157
        %1159 = vmatprep.mubr.f32.mxu0 %v837
        %1160 = vmatmul.mubr.f32.gmra.mrb[0].mxu0 %v701
        %v1161 = vpop.f32.mrb[0].mxu0
        %v1162 = vadd.f32 0.0, %v1161
        %v1163 = vpop.f32.mrb[0].mxu0
        %v1164 = vadd.f32 0.0, %v1163
        %1165 = vmatprep.mubr.f32.mxu0 %v839
        %1166 = vmatmul.mubr.f32.gmra.mrb[0].mxu0 %v702
        %v1167 = vpop.f32.mrb[0].mxu0
        %v1168 = vadd.f32 0.0, %v1167
        %v1169 = vpop.f32.mrb[0].mxu0
        %v1170 = vadd.f32 0.0, %v1169
        %1171 = vmatprep.mubr.f32.mxu0 %v841
        %1172 = vmatmul.mubr.f32.gmra.mrb[0].mxu0 %v703
        %v1173 = vpop.f32.mrb[0].mxu0
        %v1174 = vadd.f32 0.0, %v1173
        %v1175 = vpop.f32.mrb[0].mxu0
        %v1176 = vadd.f32 0.0, %v1175
        %1177 = vmatprep.mubr.f32.mxu0 %v843
        %1178 = vmatmul.mubr.f32.gmra.mrb[0].mxu0 %v704
        %v1179 = vpop.f32.mrb[0].mxu0
        %v1180 = vadd.f32 0.0, %v1179
        %v1181 = vpop.f32.mrb[0].mxu0
        %v1182 = vadd.f32 0.0, %v1181
        %1183 = vmatprep.mubr.f32.mxu0 %v845
        %1184 = vmatmul.mubr.f32.gmra.mrb[0].mxu0 %v705
        %v1185 = vpop.f32.mrb[0].mxu0
        %v1186 = vadd.f32 0.0, %v1185
        %v1187 = vpop.f32.mrb[0].mxu0
        %v1188 = vadd.f32 0.0, %v1187
        %1189 = vmatprep.mubr.f32.mxu0 %v848
        %1190 = vmatmul.mubr.f32.gmra.mrb[0].mxu0 %v706
        %v1191 = vpop.f32.mrb[0].mxu0
        %v1192 = vadd.f32 0.0, %v1191
        %v1193 = vpop.f32.mrb[0].mxu0
        %v1194 = vadd.f32 0.0, %v1193
        %1195 = vmatprep.mubr.f32.mxu0 %v850
        %1196 = vmatmul.mubr.f32.gmra.mrb[0].mxu0 %v707
        %v1197 = vpop.f32.mrb[0].mxu0
        %v1198 = vadd.f32 0.0, %v1197
        %v1199 = vpop.f32.mrb[0].mxu0
        %v1200 = vadd.f32 0.0, %v1199
        %1201 = vmatprep.mubr.f32.mxu0 %v853
        %1202 = vmatmul.mubr.f32.gmra.mrb[0].mxu0 %v708
        %v1203 = vpop.f32.mrb[0].mxu0
        %v1204 = vadd.f32 0.0, %v1203
        %v1205 = vpop.f32.mrb[0].mxu0
        %v1206 = vadd.f32 0.0, %v1205
        %1207 = vdwg.mxu0
        %vm1256 = vcmask 1046528
        %v1257 = vrot.slane %v922, 1
        %v1258 = vrot.slane %v928, 1
        %v1259 = vsel %vm1256, %v1257, %v1258
        %v1260 = vrot.slane %v934, 1
        %v1261 = vsel %vm1256, %v1258, %v1260
        %v1262 = vrot.slane %v940, 1
        %v1263 = vrot.slane %v946, 1
        %v1264 = vsel %vm1256, %v1262, %v1263
        %v1265 = vrot.slane %v952, 1
        %v1266 = vsel %vm1256, %v1263, %v1265
        %v1267 = vrot.slane %v958, 1
        %v1268 = vrot.slane %v964, 1
        %v1269 = vsel %vm1256, %v1267, %v1268
        %v1270 = vrot.slane %v970, 1
        %v1271 = vsel %vm1256, %v1268, %v1270
        %v1272 = vrot.slane %v976, 1
        %v1273 = vrot.slane %v982, 1
        %v1274 = vsel %vm1256, %v1272, %v1273
        %v1275 = vrot.slane %v988, 1
        %v1276 = vsel %vm1256, %v1273, %v1275
        %v1277 = vrot.slane %v994, 1
        %v1278 = vrot.slane %v1000, 1
        %v1279 = vsel %vm1256, %v1277, %v1278
        %v1280 = vrot.slane %v1006, 1
        %v1281 = vsel %vm1256, %v1278, %v1280
        %v1282 = vrot.slane %v1012, 1
        %v1283 = vrot.slane %v1018, 1
        %v1284 = vsel %vm1256, %v1282, %v1283
        %v1285 = vrot.slane %v1024, 1
        %v1286 = vsel %vm1256, %v1283, %v1285
        %v1287 = vrot.slane %v1030, 1
        %v1288 = vrot.slane %v1036, 1
        %v1289 = vsel %vm1256, %v1287, %v1288
        %v1290 = vrot.slane %v1042, 1
        %v1291 = vsel %vm1256, %v1288, %v1290
        %v1292 = vrot.slane %v1048, 1
        %v1293 = vrot.slane %v1054, 1
        %v1294 = vsel %vm1256, %v1292, %v1293
        %v1295 = vrot.slane %v1060, 1
        %v1296 = vsel %vm1256, %v1293, %v1295
        %v1297 = vrot.slane %v1066, 1
        %v1298 = vrot.slane %v1072, 1
        %v1299 = vsel %vm1256, %v1297, %v1298
        %v1300 = vrot.slane %v1078, 1
        %v1301 = vsel %vm1256, %v1298, %v1300
        %v1302 = vrot.slane %v1084, 1
        %v1303 = vrot.slane %v1090, 1
        %v1304 = vsel %vm1256, %v1302, %v1303
        %v1305 = vrot.slane %v1096, 1
        %v1306 = vsel %vm1256, %v1303, %v1305
        %v1307 = vrot.slane %v1102, 1
        %v1308 = vrot.slane %v1108, 1
        %v1309 = vsel %vm1256, %v1307, %v1308
        %v1310 = vrot.slane %v1114, 1
        %v1311 = vsel %vm1256, %v1308, %v1310
        %v1312 = vrot.slane %v1120, 1
        %v1313 = vrot.slane %v1126, 1
        %v1314 = vsel %vm1256, %v1312, %v1313
        %v1315 = vrot.slane %v1132, 1
        %v1316 = vsel %vm1256, %v1313, %v1315
        %v1317 = vrot.slane %v1138, 1
        %v1318 = vrot.slane %v1144, 1
        %v1319 = vsel %vm1256, %v1317, %v1318
        %v1320 = vrot.slane %v1150, 1
        %v1321 = vsel %vm1256, %v1318, %v1320
        %v1322 = vrot.slane %v1156, 1
        %v1323 = vrot.slane %v1162, 1
        %v1324 = vsel %vm1256, %v1322, %v1323
        %v1325 = vrot.slane %v1168, 1
        %v1326 = vsel %vm1256, %v1323, %v1325
        %v1327 = vrot.slane %v1174, 1
        %v1328 = vrot.slane %v1180, 1
        %v1329 = vsel %vm1256, %v1327, %v1328
        %v1330 = vrot.slane %v1186, 1
        %v1331 = vsel %vm1256, %v1328, %v1330
        %v1332 = vrot.slane %v1192, 1
        %v1333 = vrot.slane %v1198, 1
        %v1334 = vsel %vm1256, %v1332, %v1333
        %v1335 = vrot.slane %v1204, 1
        %v1336 = vsel %vm1256, %v1333, %v1335
        %1337 = vrot.lane.b32.xlu0 %v1259, 64
        %v1338 = vpop.permute.xlu0 %1337
        %1339 = vrot.lane.b32.xlu0 %v1261, 64
        %v1340 = vpop.permute.xlu0 %1339
        %1341 = vrot.lane.b32.xlu0 %v1264, 64
        %v1342 = vpop.permute.xlu0 %1341
        %1343 = vrot.lane.b32.xlu0 %v1266, 64
        %v1344 = vpop.permute.xlu0 %1343
        %1345 = vrot.lane.b32.xlu0 %v1269, 64
        %v1346 = vpop.permute.xlu0 %1345
        %1347 = vrot.lane.b32.xlu0 %v1271, 64
        %v1348 = vpop.permute.xlu0 %1347
        %1349 = vrot.lane.b32.xlu0 %v1274, 64
        %v1350 = vpop.permute.xlu0 %1349
        %1351 = vrot.lane.b32.xlu0 %v1276, 64
        %v1352 = vpop.permute.xlu0 %1351
        %1353 = vrot.lane.b32.xlu0 %v1279, 64
        %v1354 = vpop.permute.xlu0 %1353
        %1355 = vrot.lane.b32.xlu0 %v1281, 64
        %v1356 = vpop.permute.xlu0 %1355
        %1357 = vrot.lane.b32.xlu0 %v1284, 64
        %v1358 = vpop.permute.xlu0 %1357
        %1359 = vrot.lane.b32.xlu0 %v1286, 64
        %v1360 = vpop.permute.xlu0 %1359
        %1361 = vrot.lane.b32.xlu0 %v1289, 64
        %v1362 = vpop.permute.xlu0 %1361
        %1363 = vrot.lane.b32.xlu0 %v1291, 64
        %v1364 = vpop.permute.xlu0 %1363
        %1365 = vrot.lane.b32.xlu0 %v1294, 64
        %v1366 = vpop.permute.xlu0 %1365
        %1367 = vrot.lane.b32.xlu0 %v1296, 64
        %v1368 = vpop.permute.xlu0 %1367
        %1369 = vrot.lane.b32.xlu0 %v1299, 64
        %v1370 = vpop.permute.xlu0 %1369
        %1371 = vrot.lane.b32.xlu0 %v1301, 64
        %v1372 = vpop.permute.xlu0 %1371
        %1373 = vrot.lane.b32.xlu0 %v1304, 64
        %v1374 = vpop.permute.xlu0 %1373
        %1375 = vrot.lane.b32.xlu0 %v1306, 64
        %v1376 = vpop.permute.xlu0 %1375
        %1377 = vrot.lane.b32.xlu0 %v1309, 64
        %v1378 = vpop.permute.xlu0 %1377
        %1379 = vrot.lane.b32.xlu0 %v1311, 64
        %v1380 = vpop.permute.xlu0 %1379
        %1381 = vrot.lane.b32.xlu0 %v1314, 64
        %v1382 = vpop.permute.xlu0 %1381
        %1383 = vrot.lane.b32.xlu0 %v1316, 64
        %v1384 = vpop.permute.xlu0 %1383
        %1385 = vrot.lane.b32.xlu0 %v1319, 64
        %v1386 = vpop.permute.xlu0 %1385
        %1387 = vrot.lane.b32.xlu0 %v1321, 64
        %v1388 = vpop.permute.xlu0 %1387
        %1389 = vrot.lane.b32.xlu0 %v1324, 64
        %v1390 = vpop.permute.xlu0 %1389
        %1391 = vrot.lane.b32.xlu0 %v1326, 64
        %v1392 = vpop.permute.xlu0 %1391
        %1393 = vrot.lane.b32.xlu0 %v1329, 64
        %v1394 = vpop.permute.xlu0 %1393
        %1395 = vrot.lane.b32.xlu0 %v1331, 64
        %v1396 = vpop.permute.xlu0 %1395
        %1397 = vrot.lane.b32.xlu0 %v1334, 64
        %v1398 = vpop.permute.xlu0 %1397
        %1399 = vrot.lane.b32.xlu0 %v1336, 64
        %v1400 = vpop.permute.xlu0 %1399
        %v1433 = vadd.f32 %v922, %v1338
        %v1434 = vadd.f32 %v928, %v1340
        %v1435 = vadd.f32 %v940, %v1342
        %v1436 = vadd.f32 %v946, %v1344
        %v1437 = vadd.f32 %v958, %v1346
        %v1438 = vadd.f32 %v964, %v1348
        %v1439 = vadd.f32 %v976, %v1350
        %v1440 = vadd.f32 %v982, %v1352
        %v1441 = vadd.f32 %v994, %v1354
        %v1442 = vadd.f32 %v1000, %v1356
        %v1443 = vadd.f32 %v1012, %v1358
        %v1444 = vadd.f32 %v1018, %v1360
        %v1445 = vadd.f32 %v1030, %v1362
        %v1446 = vadd.f32 %v1036, %v1364
        %v1447 = vadd.f32 %v1048, %v1366
        %v1448 = vadd.f32 %v1054, %v1368
        %v1449 = vadd.f32 %v1066, %v1370
        %v1450 = vadd.f32 %v1072, %v1372
        %v1451 = vadd.f32 %v1084, %v1374
        %v1452 = vadd.f32 %v1090, %v1376
        %v1453 = vadd.f32 %v1102, %v1378
        %v1454 = vadd.f32 %v1108, %v1380
        %v1455 = vadd.f32 %v1120, %v1382
        %v1456 = vadd.f32 %v1126, %v1384
        %v1457 = vadd.f32 %v1138, %v1386
        %v1458 = vadd.f32 %v1144, %v1388
        %v1459 = vadd.f32 %v1156, %v1390
        %v1460 = vadd.f32 %v1162, %v1392
        %v1461 = vadd.f32 %v1174, %v1394
        %v1462 = vadd.f32 %v1180, %v1396
        %v1463 = vadd.f32 %v1192, %v1398
        %v1464 = vadd.f32 %v1198, %v1400
        %vm1513 = vcmask 1045504
        %v1514 = vrot.slane %v924, 2
        %v1515 = vrot.slane %v930, 2
        %v1516 = vsel %vm1513, %v1514, %v1515
        %v1517 = vrot.slane %v936, 2
        %v1518 = vsel %vm1513, %v1515, %v1517
        %v1519 = vrot.slane %v942, 2
        %v1520 = vrot.slane %v948, 2
        %v1521 = vsel %vm1513, %v1519, %v1520
        %v1522 = vrot.slane %v954, 2
        %v1523 = vsel %vm1513, %v1520, %v1522
        %v1524 = vrot.slane %v960, 2
        %v1525 = vrot.slane %v966, 2
        %v1526 = vsel %vm1513, %v1524, %v1525
        %v1527 = vrot.slane %v972, 2
        %v1528 = vsel %vm1513, %v1525, %v1527
        %v1529 = vrot.slane %v978, 2
        %v1530 = vrot.slane %v984, 2
        %v1531 = vsel %vm1513, %v1529, %v1530
        %v1532 = vrot.slane %v990, 2
        %v1533 = vsel %vm1513, %v1530, %v1532
        %v1534 = vrot.slane %v996, 2
        %v1535 = vrot.slane %v1002, 2
        %v1536 = vsel %vm1513, %v1534, %v1535
        %v1537 = vrot.slane %v1008, 2
        %v1538 = vsel %vm1513, %v1535, %v1537
        %v1539 = vrot.slane %v1014, 2
        %v1540 = vrot.slane %v1020, 2
        %v1541 = vsel %vm1513, %v1539, %v1540
        %v1542 = vrot.slane %v1026, 2
        %v1543 = vsel %vm1513, %v1540, %v1542
        %v1544 = vrot.slane %v1032, 2
        %v1545 = vrot.slane %v1038, 2
        %v1546 = vsel %vm1513, %v1544, %v1545
        %v1547 = vrot.slane %v1044, 2
        %v1548 = vsel %vm1513, %v1545, %v1547
        %v1549 = vrot.slane %v1050, 2
        %v1550 = vrot.slane %v1056, 2
        %v1551 = vsel %vm1513, %v1549, %v1550
        %v1552 = vrot.slane %v1062, 2
        %v1553 = vsel %vm1513, %v1550, %v1552
        %v1554 = vrot.slane %v1068, 2
        %v1555 = vrot.slane %v1074, 2
        %v1556 = vsel %vm1513, %v1554, %v1555
        %v1557 = vrot.slane %v1080, 2
        %v1558 = vsel %vm1513, %v1555, %v1557
        %v1559 = vrot.slane %v1086, 2
        %v1560 = vrot.slane %v1092, 2
        %v1561 = vsel %vm1513, %v1559, %v1560
        %v1562 = vrot.slane %v1098, 2
        %v1563 = vsel %vm1513, %v1560, %v1562
        %v1564 = vrot.slane %v1104, 2
        %v1565 = vrot.slane %v1110, 2
        %v1566 = vsel %vm1513, %v1564, %v1565
        %v1567 = vrot.slane %v1116, 2
        %v1568 = vsel %vm1513, %v1565, %v1567
        %v1569 = vrot.slane %v1122, 2
        %v1570 = vrot.slane %v1128, 2
        %v1571 = vsel %vm1513, %v1569, %v1570
        %v1572 = vrot.slane %v1134, 2
        %v1573 = vsel %vm1513, %v1570, %v1572
        %v1574 = vrot.slane %v1140, 2
        %v1575 = vrot.slane %v1146, 2
        %v1576 = vsel %vm1513, %v1574, %v1575
        %v1577 = vrot.slane %v1152, 2
        %v1578 = vsel %vm1513, %v1575, %v1577
        %v1579 = vrot.slane %v1158, 2
        %v1580 = vrot.slane %v1164, 2
        %v1581 = vsel %vm1513, %v1579, %v1580
        %v1582 = vrot.slane %v1170, 2
        %v1583 = vsel %vm1513, %v1580, %v1582
        %v1584 = vrot.slane %v1176, 2
        %v1585 = vrot.slane %v1182, 2
        %v1586 = vsel %vm1513, %v1584, %v1585
        %v1587 = vrot.slane %v1188, 2
        %v1588 = vsel %vm1513, %v1585, %v1587
        %v1589 = vrot.slane %v1194, 2
        %v1590 = vrot.slane %v1200, 2
        %v1591 = vsel %vm1513, %v1589, %v1590
        %v1592 = vrot.slane %v1206, 2
        %v1593 = vsel %vm1513, %v1590, %v1592
        %v1626 = vadd.f32 %v1433, %v1516
        %v1627 = vadd.f32 %v1434, %v1518
        %v1628 = vadd.f32 %v1435, %v1521
        %v1629 = vadd.f32 %v1436, %v1523
        %v1630 = vadd.f32 %v1437, %v1526
        %v1631 = vadd.f32 %v1438, %v1528
        %v1632 = vadd.f32 %v1439, %v1531
        %v1633 = vadd.f32 %v1440, %v1533
        %v1634 = vadd.f32 %v1441, %v1536
        %v1635 = vadd.f32 %v1442, %v1538
        %v1636 = vadd.f32 %v1443, %v1541
        %v1637 = vadd.f32 %v1444, %v1543
        %v1638 = vadd.f32 %v1445, %v1546
        %v1639 = vadd.f32 %v1446, %v1548
        %v1640 = vadd.f32 %v1447, %v1551
        %v1641 = vadd.f32 %v1448, %v1553
        %v1642 = vadd.f32 %v1449, %v1556
        %v1643 = vadd.f32 %v1450, %v1558
        %v1644 = vadd.f32 %v1451, %v1561
        %v1645 = vadd.f32 %v1452, %v1563
        %v1646 = vadd.f32 %v1453, %v1566
        %v1647 = vadd.f32 %v1454, %v1568
        %v1648 = vadd.f32 %v1455, %v1571
        %v1649 = vadd.f32 %v1456, %v1573
        %v1650 = vadd.f32 %v1457, %v1576
        %v1651 = vadd.f32 %v1458, %v1578
        %v1652 = vadd.f32 %v1459, %v1581
        %v1653 = vadd.f32 %v1460, %v1583
        %v1654 = vadd.f32 %v1461, %v1586
        %v1655 = vadd.f32 %v1462, %v1588
        %v1656 = vadd.f32 %v1463, %v1591
        %v1657 = vadd.f32 %v1464, %v1593
        %v1658 = vmax.f32 %v1626, 0.0
        %v1659 = vmax.f32 %v1627, 0.0
        %v1660 = vmax.f32 %v1628, 0.0
        %v1661 = vmax.f32 %v1629, 0.0
        %v1662 = vmax.f32 %v1630, 0.0
        %v1663 = vmax.f32 %v1631, 0.0
        %v1664 = vmax.f32 %v1632, 0.0
        %v1665 = vmax.f32 %v1633, 0.0
        %v1666 = vmax.f32 %v1634, 0.0
        %v1667 = vmax.f32 %v1635, 0.0
        %v1668 = vmax.f32 %v1636, 0.0
        %v1669 = vmax.f32 %v1637, 0.0
        %v1670 = vmax.f32 %v1638, 0.0
        %v1671 = vmax.f32 %v1639, 0.0
        %v1672 = vmax.f32 %v1640, 0.0
        %v1673 = vmax.f32 %v1641, 0.0
        %v1674 = vmax.f32 %v1642, 0.0
        %v1675 = vmax.f32 %v1643, 0.0
        %v1676 = vmax.f32 %v1644, 0.0
        %v1677 = vmax.f32 %v1645, 0.0
        %v1678 = vmax.f32 %v1646, 0.0
        %v1679 = vmax.f32 %v1647, 0.0
        %v1680 = vmax.f32 %v1648, 0.0
        %v1681 = vmax.f32 %v1649, 0.0
        %v1682 = vmax.f32 %v1650, 0.0
        %v1683 = vmax.f32 %v1651, 0.0
        %v1684 = vmax.f32 %v1652, 0.0
        %v1685 = vmax.f32 %v1653, 0.0
        %v1686 = vmax.f32 %v1654, 0.0
        %v1687 = vmax.f32 %v1655, 0.0
        %v1688 = vmax.f32 %v1656, 0.0
        %v1689 = vmax.f32 %v1657, 0.0
        %1690 = vst.msk [vmem:[%s265] sm:$0xff] %vm660, %v1658
        %1691 = vst.msk [vmem:[%s265 + $0x8] sm:$0xff] %vm660, %v1659
        %1692 = vst.msk [vmem:[%s265 + $0x10] sm:$0xff] %vm660, %v1660
        %1693 = vst.msk [vmem:[%s265 + $0x18] sm:$0xff] %vm660, %v1661
        %1694 = vst.msk [vmem:[%s265 + $0x20] sm:$0xff] %vm660, %v1662
        %1695 = vst.msk [vmem:[%s265 + $0x28] sm:$0xff] %vm660, %v1663
        %1696 = vst.msk [vmem:[%s265 + $0x30] sm:$0xff] %vm660, %v1664
        %1697 = vst.msk [vmem:[%s265 + $0x38] sm:$0xff] %vm660, %v1665
        %1698 = vst.msk [vmem:[%s265 + $0x40] sm:$0xff] %vm660, %v1666
        %1699 = vst.msk [vmem:[%s265 + $0x48] sm:$0xff] %vm660, %v1667
        %1700 = vst.msk [vmem:[%s265 + $0x50] sm:$0xff] %vm660, %v1668
        %1701 = vst.msk [vmem:[%s265 + $0x58] sm:$0xff] %vm660, %v1669
        %1702 = vst.msk [vmem:[%s265 + $0x60] sm:$0xff] %vm660, %v1670
        %1703 = vst.msk [vmem:[%s265 + $0x68] sm:$0xff] %vm660, %v1671
        %1704 = vst.msk [vmem:[%s265 + $0x70] sm:$0xff] %vm660, %v1672
        %1705 = vst.msk [vmem:[%s265 + $0x78] sm:$0xff] %vm660, %v1673
        %1706 = vst.msk [vmem:[%s265 + $0x80] sm:$0xff] %vm660, %v1674
        %1707 = vst.msk [vmem:[%s265 + $0x88] sm:$0xff] %vm660, %v1675
        %1708 = vst.msk [vmem:[%s265 + $0x90] sm:$0xff] %vm660, %v1676
        %1709 = vst.msk [vmem:[%s265 + $0x98] sm:$0xff] %vm660, %v1677
        %1710 = vst.msk [vmem:[%s265 + $0xa0] sm:$0xff] %vm660, %v1678
        %1711 = vst.msk [vmem:[%s265 + $0xa8] sm:$0xff] %vm660, %v1679
        %1712 = vst.msk [vmem:[%s265 + $0xb0] sm:$0xff] %vm660, %v1680
        %1713 = vst.msk [vmem:[%s265 + $0xb8] sm:$0xff] %vm660, %v1681
        %1714 = vst.msk [vmem:[%s265 + $0xc0] sm:$0xff] %vm660, %v1682
        %1715 = vst.msk [vmem:[%s265 + $0xc8] sm:$0xff] %vm660, %v1683
        %1716 = vst.msk [vmem:[%s265 + $0xd0] sm:$0xff] %vm660, %v1684
        %1717 = vst.msk [vmem:[%s265 + $0xd8] sm:$0xff] %vm660, %v1685
        %1718 = vst.msk [vmem:[%s265 + $0xe0] sm:$0xff] %vm660, %v1686
        %1719 = vst.msk [vmem:[%s265 + $0xe8] sm:$0xff] %vm660, %v1687
        %1720 = vst.msk [vmem:[%s265 + $0xf0] sm:$0xff] %vm660, %v1688
        %1721 = vst.msk [vmem:[%s265 + $0xf8] sm:$0xff] %vm660, %v1689
        %s1722 = sand.u32 %s122, 1
        %s1723 = scalar_lea.sflag [#allocation4], %s1722
        %s1724 = sand.u32 %s122, 1
        %s1725 = smul.addr %s1724, 256
        %s1726 = scalar_lea.vmem [#allocation8], %s1725
        // Predicated region
        $region45: #{tpu_custom_call.1} parent=31 // pred_check
          %p1727 = pneg %p132
        $region46: #{tpu_custom_call.1} parent=31 // pred_check_branch
          %1729 = sbr.rel (%p1727) target = $region48
        $region47: #{tpu_custom_call.1} parent=31 // pred_region
          %s1730 = smul.u32 16, %s28
          %s1732 = ssub.s32 4096, 4096
          %1733 = vsyncadd %s1723, %s1732
          %s1734 = smul.addr %s1730, 2
          %s1735 = smul.addr %s27, 32
          %s1736 = sadd.s32 %s1734, %s1735
          %s1737 = smul.addr %s1736, 128
          %s1738 = scalar_lea.hbm %s3, %s1737
          %s1739 = sshll.u32 %s1726, 4
          %s1740 = int_to_ptr.vmem [resolvable:$true] %s1739
          %1745 = dma.vmem_to_hbm [thread:$0]  %s1740, 4096, %s1738, %s1723, 128, 128, 8
        $region48: #{tpu_custom_call.1} parent=31 // pred_fallthru
          _
      $region32: #{tpu_custom_call.1} parent=5 // pred_fallthru
        _
      %p1746 = scmp.le.s32.totalorder 2, %s18
      // Predicated region
      $region49: #{tpu_custom_call.1} parent=5 // pred_check
        %p1747 = pneg %p1746
      $region50: #{tpu_custom_call.1} parent=5 // pred_check_branch
        %1749 = sbr.rel (%p1747) target = $region52
      $region51: #{tpu_custom_call.1} parent=5 // pred_region
        %s1750 = ssub.s32 %s18, 2
        // Predicated region
        $region53: #{tpu_custom_call.1} parent=51 // pred_check
          %p1751 = pneg %p138
        $region54: #{tpu_custom_call.1} parent=51 // pred_check_branch
          %1753 = sbr.rel (%p1751) target = $region56
        $region55: #{tpu_custom_call.1} parent=51 // pred_region
          %s1754 = sand.u32 %s123, 1
          %s1755 = scalar_lea.sflag [#allocation4], %s1754
          %s1756 = sand.u32 %s123, 1
          %s1757 = smul.addr %s1756, 256
          %s1758 = scalar_lea.vmem [#allocation8], %s1757
          %1759 = dma.done %s1755, 4096
        $region56: #{tpu_custom_call.1} parent=51 // pred_fallthru
          _
      $region52: #{tpu_custom_call.1} parent=5 // pred_fallthru
        _
    $region6: #{tpu_custom_call.1} parent=1 // loop_footer
      %s22 = sadd.s32 1, %s18
    $region7: #{tpu_custom_call.1} parent=1 // loop_footer_branch
      %17 = sbr.rel target = $region3
    $region8: #{tpu_custom_call.1} parent=1 // loop_exit
      _
    %1760 = vsyncpa [#allocation3], 1
    %s1761 = scalar_lea.sflag [#allocation3], 1
    %1762 = vsyncpa %s1761, 1
    %1763 = vsyncpa [#allocation6], 1
    %s1764 = scalar_lea.sflag [#allocation6], 1
    %1765 = vsyncpa %s1764, 1
    %1766 = vsyncpa [#allocation4], 1
    %s1767 = scalar_lea.sflag [#allocation4], 1
    %1768 = vsyncpa %s1767, 1

</llo_original>
